<compile_context>
chip_gen: v7x
topology: tpu7x:2x2x1
jax: 0.10.0
libtpu: 0.0.40
codegen_flags: <defaults>
</compile_context>

<pallas_src>
import jax
import jax.numpy as jnp
from jax.experimental import pallas as pl
from jax.experimental.pallas import tpu as pltpu


# ----------------------------------------------------------------------------
# Kernel factory.
#   grid = (num_row_tiles, num_k_tiles); k (contraction over nodes) is last.
#   acc_ref accumulates A_hat @ feat for the current row tile; on the final k
#   step we apply row normalization and the (optional W1) + ReLU + W2 epilogue.
# ----------------------------------------------------------------------------
def _make_kernel(apply_w1, feat_resident, tk):
    def kernel(a_ref, feat_ref, dinv_ref, *rest):
        if apply_w1:
            w1_ref, b1_ref, w2_ref, b2_ref, out_ref, acc_ref = rest
        else:
            b1_ref, w2_ref, b2_ref, out_ref, acc_ref = rest

        k = pl.program_id(1)

        if feat_resident:
            # Whole (npad, width) feature matrix lives in VMEM; slice the
            # current contraction window out of it (no HBM re-stream).
            off = pl.multiple_of(k * tk, tk)
            feat = feat_ref[pl.ds(off, tk), :]
        else:
            feat = feat_ref[...]

        # bf16 MXU matmul, fp32 accumulation.
        prod = jnp.dot(a_ref[...], feat, preferred_element_type=jnp.float32)

        @pl.when(k == 0)
        def _():
            acc_ref[...] = prod          # direct store: no zero-init pass

        @pl.when(k > 0)
        def _():
            acc_ref[...] += prod

        @pl.when(k == pl.num_programs(1) - 1)
        def _():
            # Row normalization (D^{-1/2} on the left) — cheap VPU multiply.
            s = dinv_ref[...] * acc_ref[...]                     # fp32
            if apply_w1:
                s = jnp.dot(s, w1_ref[...],
                            preferred_element_type=jnp.float32)  # fp32 epilogue
            h = jnp.maximum(s + b1_ref[...], 0.0)
            y = jnp.dot(h, w2_ref[...], preferred_element_type=jnp.float32)
            out_ref[...] = y + b2_ref[...]

    return kernel


# ----------------------------------------------------------------------------
# Wrapper / glue
# ----------------------------------------------------------------------------
def _round_up(v, m):
    return ((v + m - 1) // m) * m


def gcn_reg_forward(x, edge_index, w1, b1, w2, b2, *,
                    tm=256, tk=512, feat_resident_budget=8 << 20):
    """x: [N, F] fp32, edge_index: [2, E] int32, w1: [F, H], b1: [H],
    w2: [H, O], b2: [O].  Returns [N, O] fp32."""
    n, f = x.shape
    hid = w1.shape[1]
    o = w2.shape[1]

    assert tm % 8 == 0 and tk % 128 == 0
    assert (tk % tm == 0) or (tm % tk == 0), "tiles must divide each other"

    npad = _round_up(n, max(tm, tk))
    fp = _round_up(f, 128)
    hp = _round_up(hid, 128)
    op = _round_up(o, 128)

    # --- A_hat = A + I, built directly in bf16 (entries are small ints). ----
    # TODO(synk): for large sparse graphs replace the dense N^2 adjacency with
    # a CSR / neighbor-list gather (PrefetchScalarGridSpec) and per-(i,k)
    # nonzero-tile skipping; the dense form is HBM-bound at ~2*N^2 bytes.
    src, dst = edge_index[0], edge_index[1]
    loop = jnp.arange(n, dtype=edge_index.dtype)
    srcs = jnp.concatenate([src, loop])
    dsts = jnp.concatenate([dst, loop])
    ones_bf = jnp.ones((srcs.shape[0],), jnp.bfloat16)
    a_hat = jnp.zeros((npad, npad), jnp.bfloat16).at[dsts, srcs].add(ones_bf)

    # Degrees straight from the edge list (O(E)), self-loop included.
    deg = jnp.zeros((n,), jnp.float32).at[dst].add(1.0) + 1.0
    dinv = jax.lax.rsqrt(deg)
    dinv_pad = jnp.zeros((npad,), jnp.float32).at[:n].set(dinv)     # [npad]
    dinv_col = dinv_pad[:, None]                                     # [npad, 1]

    # Column normalization folded into X (O(N*F)).
    x_pad = jnp.zeros((npad, fp), jnp.float32).at[:n, :f].set(x)
    xs = dinv_pad[:, None] * x_pad                                   # fp32

    # Padded parameters, kept fp32 for the (tiny, once-per-row-tile) epilogue.
    w1p = jnp.zeros((fp, hp), jnp.float32).at[:f, :hid].set(w1)
    b1p = jnp.zeros((1, hp), jnp.float32).at[0, :hid].set(b1)
    w2p = jnp.zeros((hp, op), jnp.float32).at[:hid, :o].set(w2)
    b2p = jnp.zeros((1, op), jnp.float32).at[0, :o].set(b2)

    # --- Projection-order selection: stream the narrower operand. -----------
    project_first = hp < fp
    if project_first:
        feat = xs @ w1p          # Z = (D^{-1/2} X) W1, cheap O(N*F*H) in XLA
        width = hp
    else:
        feat = xs
        width = fp
    feat = feat.astype(jnp.bfloat16)

    # Keep the streamed features resident in VMEM when they fit a budget.
    feat_resident = (npad * width * 2) <= feat_resident_budget

    grid = (npad // tm, npad // tk)

    kernel = _make_kernel(apply_w1=not project_first,
                          feat_resident=feat_resident, tk=tk)

    if feat_resident:
        feat_spec = pl.BlockSpec((npad, width), lambda i, k: (0, 0))
    else:
        feat_spec = pl.BlockSpec((tk, width), lambda i, k: (k, 0))

    in_specs = [
        pl.BlockSpec((tm, tk), lambda i, k: (i, k)),    # A_hat tile
        feat_spec,                                      # features (Xs or Z)
        pl.BlockSpec((tm, 1), lambda i, k: (i, 0)),     # dinv (row scaling)
    ]
    operands = [a_hat, feat, dinv_col]
    if not project_first:
        in_specs.append(pl.BlockSpec((fp, hp), lambda i, k: (0, 0)))   # W1
        operands.append(w1p)
    in_specs += [
        pl.BlockSpec((1, hp), lambda i, k: (0, 0)),     # b1
        pl.BlockSpec((hp, op), lambda i, k: (0, 0)),    # W2
        pl.BlockSpec((1, op), lambda i, k: (0, 0)),     # b2
    ]
    operands += [b1p, w2p, b2p]

    # Rough VMEM working-set estimate (double-buffered inputs + scratch).
    est = (2 * tm * tk * 2                                            # A tiles
           + 2 * (npad * width * 2 if feat_resident else tk * width * 2)
           + 2 * tm * 4                                               # dinv
           + (2 * fp * hp * 4 if not project_first else 0)            # W1
           + 2 * 8 * hp * 4 + 2 * hp * op * 4 + 2 * 8 * op * 4        # b1,W2,b2
           + 2 * tm * op * 4                                          # out
           + tm * width * 4)                                          # acc
    compiler_kwargs = dict(dimension_semantics=("parallel", "arbitrary"))
    if est > (12 << 20):
        # Raise the scoped VMEM limit (v5e default is 16 MiB); stay well under
        # v7x's 64 MiB physical VMEM.
        compiler_kwargs["vmem_limit_bytes"] = int(min(est * 1.3, 56 << 20))

    out = pl.pallas_call(
        kernel,
        out_shape=jax.ShapeDtypeStruct((npad, op), jnp.float32),
        grid_spec=pltpu.PrefetchScalarGridSpec(
            num_scalar_prefetch=0,
            grid=grid,
            in_specs=in_specs,
            out_specs=pl.BlockSpec((tm, op), lambda i, k: (i, 0)),
            scratch_shapes=[pltpu.VMEM((tm, width), jnp.float32)],
        ),
        compiler_params=pltpu.CompilerParams(**compiler_kwargs),
    )(*operands)

    return out[:n, :o]


# ----------------------------------------------------------------------------
# Pure-JAX reference (fp32) for a sanity check.
# ----------------------------------------------------------------------------
def gcn_reg_ref(x, edge_index, w1, b1, w2, b2):
    n = x.shape[0]
    src, dst = edge_index[0], edge_index[1]
    loop = jnp.arange(n, dtype=edge_index.dtype)
    s = jnp.concatenate([src, loop])
    d = jnp.concatenate([dst, loop])
    a = jnp.zeros((n, n), jnp.float32).at[d, s].add(1.0)
    deg = a.sum(axis=1)
    dinv = jnp.where(deg > 0.0, jax.lax.rsqrt(deg), 0.0)
    an = dinv[:, None] * a * dinv[None, :]
    hdn = jnp.maximum(an @ (x @ w1) + b1, 0.0)
    return hdn @ w2 + b2


# ----------------------------------------------------------------------------
# Deterministic parameter init (shapes follow GCNReg.__init__):
#   conv1   : GCNConv(num_features -> hidden_channels)  -> W1[F,H], b1[H]
#   linear1 : Linear(hidden_channels -> out_dim)        -> W2[H,O], b2[O]
# ----------------------------------------------------------------------------
def init_params(key, num_features, hidden_channels, out_dim):
    k1, k2, k3 = jax.random.split(key, 3)
    bound1 = (6.0 / (num_features + hidden_channels)) ** 0.5   # glorot
    w1 = jax.random.uniform(k1, (num_features, hidden_channels),
                            jnp.float32, -bound1, bound1)
    b1 = jnp.zeros((hidden_channels,), jnp.float32)
    bound2 = 1.0 / (hidden_channels ** 0.5)                    # nn.Linear default
    w2 = jax.random.uniform(k2, (hidden_channels, out_dim),
                            jnp.float32, -bound2, bound2)
    b2 = jax.random.uniform(k3, (out_dim,), jnp.float32, -bound2, bound2)
    return w1, b1, w2, b2


def _ring_edges(n):
    idx = jnp.arange(n, dtype=jnp.int32)
    nxt = (idx + 1) % n
    return jnp.stack(
        [jnp.concatenate([idx, nxt]), jnp.concatenate([nxt, idx])], axis=0)


if __name__ == "__main__":
    key = jax.random.PRNGKey(0)

    # --- Case 1: F <= H (aggregate-first path) ------------------------------
    N, F, H, O = 16, 8, 32, 3
    kx, kp, key = jax.random.split(key, 3)
    x = jax.random.normal(kx, (N, F), jnp.float32)
    edge_index = _ring_edges(N)
    w1, b1, w2, b2 = init_params(kp, F, H, O)

    out = gcn_reg_forward(x, edge_index, w1, b1, w2, b2)
    jax.block_until_ready(out)
    assert out.shape == (N, O)
    ref = gcn_reg_ref(x, edge_index, w1, b1, w2, b2)
    assert bool(jnp.allclose(out, ref, atol=0.15, rtol=0.05)), "mismatch (agg-first)"

    # --- Case 2: F > H (project-first path) ---------------------------------
    N2, F2, H2, O2 = 16, 200, 16, 3
    kx2, kp2, key = jax.random.split(key, 3)
    x2 = jax.random.normal(kx2, (N2, F2), jnp.float32)
    edge_index2 = _ring_edges(N2)
    w1b, b1b, w2b, b2b = init_params(kp2, F2, H2, O2)

    out2 = gcn_reg_forward(x2, edge_index2, w1b, b1b, w2b, b2b)
    jax.block_until_ready(out2)
    assert out2.shape == (N2, O2)
    ref2 = gcn_reg_ref(x2, edge_index2, w1b, b1b, w2b, b2b)
    assert bool(jnp.allclose(out2, ref2, atol=0.15, rtol=0.05)), "mismatch (proj-first)"

    print("KERNEL_OK")
</pallas_src>

<mosaic_0001>
module attributes {stable_mosaic.version = 11 : i64} {
  func.func @kernel(%arg0: i32, %arg1: i32, %arg2: memref<256x512xbf16, #tpu.memory_space<vmem>>, %arg3: memref<512x128xbf16, #tpu.memory_space<vmem>>, %arg4: memref<256x1xf32, #tpu.memory_space<vmem>>, %arg5: memref<128x128xf32, #tpu.memory_space<vmem>>, %arg6: memref<1x128xf32, #tpu.memory_space<vmem>>, %arg7: memref<128x128xf32, #tpu.memory_space<vmem>>, %arg8: memref<1x128xf32, #tpu.memory_space<vmem>>, %arg9: memref<256x128xf32, #tpu.memory_space<vmem>>, %arg10: memref<256x128xf32, #tpu.memory_space<vmem>>) attributes {dimension_semantics = [#tpu.dimension_semantics<parallel>, #tpu.dimension_semantics<arbitrary>], iteration_bounds = array<i64: 2, 1>, scalar_prefetch = 0 : i64, scratch_operands = 1 : i64, tpu.core_type = #tpu.core_type<tc>, window_params = [{transform_indices = @transform_0, window_bounds = array<i64: 256, 512>}, {pipeline_mode = #tpu.pipeline_mode<synchronous>, transform_indices = @transform_1, window_bounds = array<i64: 512, 128>}, {transform_indices = @transform_2, window_bounds = array<i64: 256, 1>}, {pipeline_mode = #tpu.pipeline_mode<synchronous>, transform_indices = @transform_3, window_bounds = array<i64: 128, 128>}, {pipeline_mode = #tpu.pipeline_mode<synchronous>, transform_indices = @transform_4, window_bounds = array<i64: 1, 128>}, {pipeline_mode = #tpu.pipeline_mode<synchronous>, transform_indices = @transform_5, window_bounds = array<i64: 128, 128>}, {pipeline_mode = #tpu.pipeline_mode<synchronous>, transform_indices = @transform_6, window_bounds = array<i64: 1, 128>}, {transform_indices = @transform_7, window_bounds = array<i64: 256, 128>}]} {
    %c512_i32 = arith.constant 512 : i32
    %0 = arith.muli %arg1, %c512_i32 : i32
    %1 = tpu.assume_multiple %0, 512 : i32
    %2 = arith.index_cast %1 : i32 to index
    %c0 = arith.constant 0 : index
    %3 = vector.load %arg3[%2, %c0] : memref<512x128xbf16, #tpu.memory_space<vmem>>, vector<512x128xbf16>
    %c0_0 = arith.constant 0 : index
    %c0_1 = arith.constant 0 : index
    %4 = vector.load %arg2[%c0_0, %c0_1] : memref<256x512xbf16, #tpu.memory_space<vmem>>, vector<256x512xbf16>
    %cst = arith.constant dense<0.000000e+00> : vector<256x128xf32>
    %5 = tpu.matmul %4, %3, %cst {dimension_numbers = #tpu.dot_dimension_numbers<[1], [0], [0], [1], [0, 0, 1, 1], [], []>} : vector<256x512xbf16>, vector<512x128xbf16>, vector<256x128xf32> -> vector<256x128xf32>
    %c0_i32 = arith.constant 0 : i32
    %6 = arith.cmpi eq, %arg1, %c0_i32 : i32
    %7 = arith.extui %6 : i1 to i32
    %c0_i32_2 = arith.constant 0 : i32
    %8 = arith.cmpi ne, %7, %c0_i32_2 : i32
    scf.if %8 {
      %c0_7 = arith.constant 0 : index
      %c0_8 = arith.constant 0 : index
      %15 = vector.load %arg10[%c0_7, %c0_8] : memref<256x128xf32, #tpu.memory_space<vmem>>, vector<256x128xf32>
      tpu.vector_store %arg10[%c0_7, %c0_8], %5 {strides = array<i32>} : memref<256x128xf32, #tpu.memory_space<vmem>>, vector<256x128xf32>,
    } else {
    }
    %c0_i32_3 = arith.constant 0 : i32
    %9 = arith.cmpi sgt, %arg1, %c0_i32_3 : i32
    %10 = arith.extui %9 : i1 to i32
    %c0_i32_4 = arith.constant 0 : i32
    %11 = arith.cmpi ne, %10, %c0_i32_4 : i32
    scf.if %11 {
      %c0_7 = arith.constant 0 : index
      %c0_8 = arith.constant 0 : index
      %15 = vector.load %arg10[%c0_7, %c0_8] : memref<256x128xf32, #tpu.memory_space<vmem>>, vector<256x128xf32>
      %16 = arith.addf %15, %5 : vector<256x128xf32>
      %c0_9 = arith.constant 0 : index
      %c0_10 = arith.constant 0 : index
      %17 = vector.load %arg10[%c0_9, %c0_10] : memref<256x128xf32, #tpu.memory_space<vmem>>, vector<256x128xf32>
      tpu.vector_store %arg10[%c0_9, %c0_10], %16 {strides = array<i32>} : memref<256x128xf32, #tpu.memory_space<vmem>>, vector<256x128xf32>,
    } else {
    }
    %c0_i32_5 = arith.constant 0 : i32
    %12 = arith.cmpi eq, %arg1, %c0_i32_5 : i32
    %13 = arith.extui %12 : i1 to i32
    %c0_i32_6 = arith.constant 0 : i32
    %14 = arith.cmpi ne, %13, %c0_i32_6 : i32
    scf.if %14 {
      %c0_7 = arith.constant 0 : index
      %c0_8 = arith.constant 0 : index
      %15 = vector.load %arg4[%c0_7, %c0_8] : memref<256x1xf32, #tpu.memory_space<vmem>>, vector<256x1xf32>
      %c0_9 = arith.constant 0 : index
      %c0_10 = arith.constant 0 : index
      %16 = vector.load %arg10[%c0_9, %c0_10] : memref<256x128xf32, #tpu.memory_space<vmem>>, vector<256x128xf32>
      %17 = vector.broadcast %15 : vector<256x1xf32> to vector<256x128xf32>
      %18 = arith.mulf %17, %16 : vector<256x128xf32>
      %c0_11 = arith.constant 0 : index
      %c0_12 = arith.constant 0 : index
      %19 = vector.load %arg5[%c0_11, %c0_12] : memref<128x128xf32, #tpu.memory_space<vmem>>, vector<128x128xf32>
      %cst_13 = arith.constant dense<0.000000e+00> : vector<256x128xf32>
      %20 = tpu.matmul %18, %19, %cst_13 {dimension_numbers = #tpu.dot_dimension_numbers<[1], [0], [0], [1], [0, 0, 1, 1], [], []>} : vector<256x128xf32>, vector<128x128xf32>, vector<256x128xf32> -> vector<256x128xf32>
      %c0_14 = arith.constant 0 : index
      %c0_15 = arith.constant 0 : index
      %21 = vector.load %arg6[%c0_14, %c0_15] : memref<1x128xf32, #tpu.memory_space<vmem>>, vector<1x128xf32>
      %22 = vector.broadcast %21 : vector<1x128xf32> to vector<256x128xf32>
      %23 = arith.addf %20, %22 : vector<256x128xf32>
      %cst_16 = arith.constant 0.000000e+00 : f32
      %24 = vector.broadcast %cst_16 : f32 to vector<256x128xf32>
      %25 = arith.maximumf %23, %24 : vector<256x128xf32>
      %c0_17 = arith.constant 0 : index
      %c0_18 = arith.constant 0 : index
      %26 = vector.load %arg7[%c0_17, %c0_18] : memref<128x128xf32, #tpu.memory_space<vmem>>, vector<128x128xf32>
      %cst_19 = arith.constant dense<0.000000e+00> : vector<256x128xf32>
      %27 = tpu.matmul %25, %26, %cst_19 {dimension_numbers = #tpu.dot_dimension_numbers<[1], [0], [0], [1], [0, 0, 1, 1], [], []>} : vector<256x128xf32>, vector<128x128xf32>, vector<256x128xf32> -> vector<256x128xf32>
      %c0_20 = arith.constant 0 : index
      %c0_21 = arith.constant 0 : index
      %28 = vector.load %arg8[%c0_20, %c0_21] : memref<1x128xf32, #tpu.memory_space<vmem>>, vector<1x128xf32>
      %29 = vector.broadcast %28 : vector<1x128xf32> to vector<256x128xf32>
      %30 = arith.addf %27, %29 : vector<256x128xf32>
      %c0_22 = arith.constant 0 : index
      %c0_23 = arith.constant 0 : index
      %31 = vector.load %arg9[%c0_22, %c0_23] : memref<256x128xf32, #tpu.memory_space<vmem>>, vector<256x128xf32>
      tpu.vector_store %arg9[%c0_22, %c0_23], %30 {strides = array<i32>} : memref<256x128xf32, #tpu.memory_space<vmem>>, vector<256x128xf32>,
    } else {
    }
    return
  }
  func.func @transform_0(%arg0: i32, %arg1: i32) -> (i32, i32) {
    %c0_i32 = arith.constant 0 : i32
    return %arg0, %arg1 : i32, i32
  }
  func.func @transform_1(%arg0: i32, %arg1: i32) -> (i32, i32) {
    %c0_i32 = arith.constant 0 : i32
    %c0_i32_0 = arith.constant 0 : i32
    %c0_i32_1 = arith.constant 0 : i32
    return %c0_i32, %c0_i32_0 : i32, i32
  }
  func.func @transform_2(%arg0: i32, %arg1: i32) -> (i32, i32) {
    %c0_i32 = arith.constant 0 : i32
    %c0_i32_0 = arith.constant 0 : i32
    return %arg0, %c0_i32 : i32, i32
  }
  func.func @transform_3(%arg0: i32, %arg1: i32) -> (i32, i32) {
    %c0_i32 = arith.constant 0 : i32
    %c0_i32_0 = arith.constant 0 : i32
    %c0_i32_1 = arith.constant 0 : i32
    return %c0_i32, %c0_i32_0 : i32, i32
  }
  func.func @transform_4(%arg0: i32, %arg1: i32) -> (i32, i32) {
    %c0_i32 = arith.constant 0 : i32
    %c0_i32_0 = arith.constant 0 : i32
    %c0_i32_1 = arith.constant 0 : i32
    return %c0_i32, %c0_i32_0 : i32, i32
  }
  func.func @transform_5(%arg0: i32, %arg1: i32) -> (i32, i32) {
    %c0_i32 = arith.constant 0 : i32
    %c0_i32_0 = arith.constant 0 : i32
    %c0_i32_1 = arith.constant 0 : i32
    return %c0_i32, %c0_i32_0 : i32, i32
  }
  func.func @transform_6(%arg0: i32, %arg1: i32) -> (i32, i32) {
    %c0_i32 = arith.constant 0 : i32
    %c0_i32_0 = arith.constant 0 : i32
    %c0_i32_1 = arith.constant 0 : i32
    return %c0_i32, %c0_i32_0 : i32, i32
  }
  func.func @transform_7(%arg0: i32, %arg1: i32) -> (i32, i32) {
    %c0_i32 = arith.constant 0 : i32
    %c0_i32_0 = arith.constant 0 : i32
    return %arg0, %c0_i32 : i32, i32
  }
}

</mosaic_0001>

<llo_original>
// kernel: tpu_custom_call.1
$region0: #{tpu_custom_call.1}
  #allocation0 [shape = 'u32[]', space=smem, size = 0x4, offset = 0x4, fixed_abs, tag = 'smem constant byte address 0x4 - core index']
  #allocation1 [shape = 'u32[144,128]{1,0:T(1,128)}', space=vmem, size = 0x12000, scoped, tag = 'internal scratch']
  #allocation2 [shape = 'f32[256,128]{1,0:T(8,128)}', space=vmem, size = 0x20000, scoped, tag = 'scratch operand']
  %s0 = inlined_call_operand.hbm [shape: bf16[512,512], index: 0, kind: input, shape index: {}]
  %s1 = inlined_call_operand.vmem [shape: bf16[512,128], index: 1, kind: input, shape index: {}]
  %s2 = inlined_call_operand.vmem [shape: f32[512,1], index: 2, kind: input, shape index: {}]
  %s3 = inlined_call_operand.vmem [shape: f32[128,128], index: 3, kind: input, shape index: {}]
  %s4 = inlined_call_operand.vmem [shape: f32[1,128], index: 4, kind: input, shape index: {}]
  %s5 = inlined_call_operand.vmem [shape: f32[128,128], index: 5, kind: input, shape index: {}]
  %s6 = inlined_call_operand.vmem [shape: f32[1,128], index: 6, kind: input, shape index: {}]
  %s7 = inlined_call_operand.hbm [shape: f32[512,128], index: 7, kind: output, shape index: {}]
  %s8 = sld [smem:[#allocation0]]
  $region77: #{tpu_custom_call.1} parent=0
    _
  %s10 = ssub.s32 1, %s8
  %s11 = scalar_select 0, %s10, %s8
  $region1: #{tpu_custom_call.1} parent=0
    #allocation3 [shape = 'u8[524288]{0}', space=vmem, size = 0x80000, scoped, tag = 'input window, operand 0']
    #allocation4 [shape = 's32[2]{0}', space=sflag, size = 0x8, scoped, tag = 'scoped memory for tpu_custom_call.1']
    #allocation5 [shape = 's32[2]{0}', space=sflag, size = 0x8, scoped, tag = 'scoped memory for tpu_custom_call.1']
    #allocation6 [shape = 'u8[262144]{0}', space=vmem, size = 0x40000, scoped, tag = 'output window, operand 0']
    %12 = vsyncpa [#allocation4], 0
    %s13 = scalar_lea.sflag [#allocation4], 1
    %14 = vsyncpa %s13, 0
    %15 = vsyncpa [#allocation5], 0
    %s16 = scalar_lea.sflag [#allocation5], 1
    %17 = vsyncpa %s16, 0
    loop: start=0, step=1, limit=4
    $region2: #{tpu_custom_call.1} parent=1 // loop_pre_header
      _
    $region3: #{tpu_custom_call.1} parent=1 // loop_header
      %s19 = sphi 0, %s23
      %p20 = scmp.ge.s32.totalorder %s19, 4
      %s26 = sphi 0, %s38
      %s27 = sphi 0, %s34
      %s28 = sphi 0, %s26
      %s29 = sphi 0, %s27
      %s30 = sphi 0, %s28
      %s31 = sphi 0, %s29
      %s43 = sphi 0, %s45
      %s46 = sphi 0, %s43
      %s47 = sphi 0, %s46
      %s63 = sphi 0, %s47
      %s67 = sphi 0, %s67
      %s69 = sphi 0, %s67
      %s70 = sphi 0, %s69
      %s84 = sphi 0, %s70
      %s90 = sphi 0, %s92
      %s93 = sphi 0, %s90
      %s94 = sphi 0, %s93
      %s110 = sphi 0, %s94
      %s114 = sphi 0, %s114
      %s116 = sphi 0, %s114
      %s117 = sphi 0, %s116
      %s131 = sphi 0, %s117
      %s135 = sphi 0, %s135
      %s137 = sphi 0, %s135
      %s138 = sphi 0, %s137
      %s152 = sphi 0, %s138
      %s156 = sphi 0, %s156
      %s158 = sphi 0, %s156
      %s159 = sphi 0, %s158
      %s173 = sphi 0, %s159
      %s177 = sphi 0, %s177
      %s179 = sphi 0, %s177
      %s180 = sphi 0, %s179
      %s194 = sphi 0, %s180
      %s200 = sphi 0, %s202
      %s203 = sphi 0, %s200
      %s204 = sphi 0, %s203
      %s220 = sphi 0, %s204
    $region4: #{tpu_custom_call.1} parent=1 // loop_header_branch
      %22 = sbr.rel (%p20) target = $region8
    $region5: #{tpu_custom_call.1} parent=1 // loop_body
      %s24 = ssub.s32 %s19, 1
      %s25 = ssub.s32 %s19, 2
      %s32 = sadd.s32 1, %s27
      %p33 = scmp.ge.s32.totalorder %s32, 1
      %s34 = scalar_select %p33, 0, %s32
      %s35 = sadd.s32 1, %s26
      %s36 = scalar_select %p33, %s35, %s26
      %p37 = scmp.ge.s32.totalorder %s36, 2
      %s38 = scalar_select %p37, 0, %s36
      %s39 = ssub.s32 %s26, %s38
      %s40 = ssub.s32 %s27, %s34
      %s41 = sor.u32 %s39, %s40
      %p42 = scmp.eq.s32.totalorder %s41, 0
      %s44 = sadd.s32 %s43, 1
      %s45 = scalar_select %p42, %s43, %s44
      %p48 = pneg %p42
      %p49 = scmp.eq.s32.totalorder %s19, 1
      %p50 = por %p48, %p49
      %p51 = scmp.ne.s32.totalorder %s43, %s46
      %p52 = scmp.eq.s32.totalorder %s19, 0
      %p53 = por %p51, %p52
      %p54 = scmp.ne.s32.totalorder %s43, %s46
      %p55 = scmp.eq.s32.totalorder %s24, 1
      %p56 = por %p54, %p55
      %p57 = scmp.ne.s32.totalorder %s46, %s47
      %p58 = scmp.eq.s32.totalorder %s24, 0
      %p59 = por %p57, %p58
      %p60 = scmp.ne.s32.totalorder %s46, %s47
      %p61 = scmp.eq.s32.totalorder %s25, 1
      %p62 = por %p60, %p61
      %p64 = scmp.ne.s32.totalorder %s47, %s63
      %p65 = scmp.eq.s32.totalorder %s25, 0
      %p66 = por %p64, %p65
      %s68 = sadd.s32 %s67, 1
      %p71 = scmp.eq.s32.totalorder %s19, 1
      %p72 = scmp.ne.s32.totalorder %s67, %s69
      %p73 = scmp.eq.s32.totalorder %s19, 0
      %p74 = por %p72, %p73
      %p75 = scmp.ne.s32.totalorder %s67, %s69
      %p76 = scmp.eq.s32.totalorder %s24, 1
      %p77 = por %p75, %p76
      %p78 = scmp.ne.s32.totalorder %s69, %s70
      %p79 = scmp.eq.s32.totalorder %s24, 0
      %p80 = por %p78, %p79
      %p81 = scmp.ne.s32.totalorder %s69, %s70
      %p82 = scmp.eq.s32.totalorder %s25, 1
      %p83 = por %p81, %p82
      %p85 = scmp.ne.s32.totalorder %s70, %s84
      %p86 = scmp.eq.s32.totalorder %s25, 0
      %p87 = por %p85, %p86
      %s88 = ssub.s32 %s26, %s38
      %p89 = scmp.eq.s32.totalorder %s88, 0
      %s91 = sadd.s32 %s90, 1
      %s92 = scalar_select %p89, %s90, %s91
      %p95 = pneg %p89
      %p96 = scmp.eq.s32.totalorder %s19, 1
      %p97 = por %p95, %p96
      %p98 = scmp.ne.s32.totalorder %s90, %s93
      %p99 = scmp.eq.s32.totalorder %s19, 0
      %p100 = por %p98, %p99
      %p101 = scmp.ne.s32.totalorder %s90, %s93
      %p102 = scmp.eq.s32.totalorder %s24, 1
      %p103 = por %p101, %p102
      %p104 = scmp.ne.s32.totalorder %s93, %s94
      %p105 = scmp.eq.s32.totalorder %s24, 0
      %p106 = por %p104, %p105
      %p107 = scmp.ne.s32.totalorder %s93, %s94
      %p108 = scmp.eq.s32.totalorder %s25, 1
      %p109 = por %p107, %p108
      %p111 = scmp.ne.s32.totalorder %s94, %s110
      %p112 = scmp.eq.s32.totalorder %s25, 0
      %p113 = por %p111, %p112
      %s115 = sadd.s32 %s114, 1
      %p118 = scmp.eq.s32.totalorder %s19, 1
      %p119 = scmp.ne.s32.totalorder %s114, %s116
      %p120 = scmp.eq.s32.totalorder %s19, 0
      %p121 = por %p119, %p120
      %p122 = scmp.ne.s32.totalorder %s114, %s116
      %p123 = scmp.eq.s32.totalorder %s24, 1
      %p124 = por %p122, %p123
      %p125 = scmp.ne.s32.totalorder %s116, %s117
      %p126 = scmp.eq.s32.totalorder %s24, 0
      %p127 = por %p125, %p126
      %p128 = scmp.ne.s32.totalorder %s116, %s117
      %p129 = scmp.eq.s32.totalorder %s25, 1
      %p130 = por %p128, %p129
      %p132 = scmp.ne.s32.totalorder %s117, %s131
      %p133 = scmp.eq.s32.totalorder %s25, 0
      %p134 = por %p132, %p133
      %s136 = sadd.s32 %s135, 1
      %p139 = scmp.eq.s32.totalorder %s19, 1
      %p140 = scmp.ne.s32.totalorder %s135, %s137
      %p141 = scmp.eq.s32.totalorder %s19, 0
      %p142 = por %p140, %p141
      %p143 = scmp.ne.s32.totalorder %s135, %s137
      %p144 = scmp.eq.s32.totalorder %s24, 1
      %p145 = por %p143, %p144
      %p146 = scmp.ne.s32.totalorder %s137, %s138
      %p147 = scmp.eq.s32.totalorder %s24, 0
      %p148 = por %p146, %p147
      %p149 = scmp.ne.s32.totalorder %s137, %s138
      %p150 = scmp.eq.s32.totalorder %s25, 1
      %p151 = por %p149, %p150
      %p153 = scmp.ne.s32.totalorder %s138, %s152
      %p154 = scmp.eq.s32.totalorder %s25, 0
      %p155 = por %p153, %p154
      %s157 = sadd.s32 %s156, 1
      %p160 = scmp.eq.s32.totalorder %s19, 1
      %p161 = scmp.ne.s32.totalorder %s156, %s158
      %p162 = scmp.eq.s32.totalorder %s19, 0
      %p163 = por %p161, %p162
      %p164 = scmp.ne.s32.totalorder %s156, %s158
      %p165 = scmp.eq.s32.totalorder %s24, 1
      %p166 = por %p164, %p165
      %p167 = scmp.ne.s32.totalorder %s158, %s159
      %p168 = scmp.eq.s32.totalorder %s24, 0
      %p169 = por %p167, %p168
      %p170 = scmp.ne.s32.totalorder %s158, %s159
      %p171 = scmp.eq.s32.totalorder %s25, 1
      %p172 = por %p170, %p171
      %p174 = scmp.ne.s32.totalorder %s159, %s173
      %p175 = scmp.eq.s32.totalorder %s25, 0
      %p176 = por %p174, %p175
      %s178 = sadd.s32 %s177, 1
      %p181 = scmp.eq.s32.totalorder %s19, 1
      %p182 = scmp.ne.s32.totalorder %s177, %s179
      %p183 = scmp.eq.s32.totalorder %s19, 0
      %p184 = por %p182, %p183
      %p185 = scmp.ne.s32.totalorder %s177, %s179
      %p186 = scmp.eq.s32.totalorder %s24, 1
      %p187 = por %p185, %p186
      %p188 = scmp.ne.s32.totalorder %s179, %s180
      %p189 = scmp.eq.s32.totalorder %s24, 0
      %p190 = por %p188, %p189
      %p191 = scmp.ne.s32.totalorder %s179, %s180
      %p192 = scmp.eq.s32.totalorder %s25, 1
      %p193 = por %p191, %p192
      %p195 = scmp.ne.s32.totalorder %s180, %s194
      %p196 = scmp.eq.s32.totalorder %s25, 0
      %p197 = por %p195, %p196
      %s198 = ssub.s32 %s26, %s38
      %p199 = scmp.eq.s32.totalorder %s198, 0
      %s201 = sadd.s32 %s200, 1
      %s202 = scalar_select %p199, %s200, %s201
      %p205 = pneg %p199
      %p206 = scmp.eq.s32.totalorder %s19, 1
      %p207 = por %p205, %p206
      %p208 = scmp.ne.s32.totalorder %s200, %s203
      %p209 = scmp.eq.s32.totalorder %s19, 0
      %p210 = por %p208, %p209
      %p211 = scmp.ne.s32.totalorder %s200, %s203
      %p212 = scmp.eq.s32.totalorder %s24, 1
      %p213 = por %p211, %p212
      %p214 = scmp.ne.s32.totalorder %s203, %s204
      %p215 = scmp.eq.s32.totalorder %s24, 0
      %p216 = por %p214, %p215
      %p217 = scmp.ne.s32.totalorder %s203, %s204
      %p218 = scmp.eq.s32.totalorder %s25, 1
      %p219 = por %p217, %p218
      %p221 = scmp.ne.s32.totalorder %s204, %s220
      %p222 = scmp.eq.s32.totalorder %s25, 0
      %p223 = por %p221, %p222
      %p224 = scmp.le.s32.totalorder 1, %s19
      %p225 = scmp.lt.s32.totalorder %s19, 3
      %p226 = pnand %p224, %p225
      %p227 = pneg %p226
      // Predicated region
      $region9: #{tpu_custom_call.1} parent=5 // pred_check
        _
      $region10: #{tpu_custom_call.1} parent=5 // pred_check_branch
        %229 = sbr.rel (%p226) target = $region12
      $region11: #{tpu_custom_call.1} parent=5 // pred_region
        %s230 = ssub.s32 %s19, 1
        // Predicated region
        $region13: #{tpu_custom_call.1} parent=11 // pred_check
          %p231 = pneg %p80
        $region14: #{tpu_custom_call.1} parent=11 // pred_check_branch
          %233 = sbr.rel (%p231) target = $region16
        $region15: #{tpu_custom_call.1} parent=11 // pred_region
          _
        $region16: #{tpu_custom_call.1} parent=11 // pred_fallthru
          _
        // Predicated region
        $region17: #{tpu_custom_call.1} parent=11 // pred_check
          %p234 = pneg %p127
        $region18: #{tpu_custom_call.1} parent=11 // pred_check_branch
          %236 = sbr.rel (%p234) target = $region20
        $region19: #{tpu_custom_call.1} parent=11 // pred_region
          _
        $region20: #{tpu_custom_call.1} parent=11 // pred_fallthru
          _
        // Predicated region
        $region21: #{tpu_custom_call.1} parent=11 // pred_check
          %p237 = pneg %p148
        $region22: #{tpu_custom_call.1} parent=11 // pred_check_branch
          %239 = sbr.rel (%p237) target = $region24
        $region23: #{tpu_custom_call.1} parent=11 // pred_region
          _
        $region24: #{tpu_custom_call.1} parent=11 // pred_fallthru
          _
        // Predicated region
        $region25: #{tpu_custom_call.1} parent=11 // pred_check
          %p240 = pneg %p169
        $region26: #{tpu_custom_call.1} parent=11 // pred_check_branch
          %242 = sbr.rel (%p240) target = $region28
        $region27: #{tpu_custom_call.1} parent=11 // pred_region
          _
        $region28: #{tpu_custom_call.1} parent=11 // pred_fallthru
          _
        // Predicated region
        $region29: #{tpu_custom_call.1} parent=11 // pred_check
          %p243 = pneg %p190
        $region30: #{tpu_custom_call.1} parent=11 // pred_check_branch
          %245 = sbr.rel (%p243) target = $region32
        $region31: #{tpu_custom_call.1} parent=11 // pred_region
          _
        $region32: #{tpu_custom_call.1} parent=11 // pred_fallthru
          _
      $region12: #{tpu_custom_call.1} parent=5 // pred_fallthru
        _
      %p246 = scmp.lt.s32.totalorder %s19, 2
      // Predicated region
      $region33: #{tpu_custom_call.1} parent=5 // pred_check
        %p247 = pneg %p246
      $region34: #{tpu_custom_call.1} parent=5 // pred_check_branch
        %249 = sbr.rel (%p247) target = $region36
      $region35: #{tpu_custom_call.1} parent=5 // pred_region
        // Predicated region
        $region37: #{tpu_custom_call.1} parent=35 // pred_check
          %p250 = pneg %p53
        $region38: #{tpu_custom_call.1} parent=35 // pred_check_branch
          %252 = sbr.rel (%p250) target = $region40
        $region39: #{tpu_custom_call.1} parent=35 // pred_region
          %s253 = sand.u32 %s43, 1
          %s254 = scalar_lea.sflag [#allocation4], %s253
          %s255 = sand.u32 %s43, 1
          %s256 = smul.addr %s255, 512
          %s257 = scalar_lea.vmem [#allocation3], %s256
          %s258 = smul.u32 32, %s26
          %s259 = smul.u32 4, %s27
          %s261 = ssub.s32 8192, 8192
          %262 = vsyncadd %s254, %s261
          %s263 = smul.addr %s258, 4
          %s264 = sadd.s32 %s259, %s263
          %s265 = smul.addr %s264, 64
          %s266 = scalar_lea.hbm %s0, %s265
          %s267 = sshll.u32 %s257, 4
          %s268 = int_to_ptr.vmem [resolvable:$true] %s267
          %273 = dma.hbm_to_vmem [thread:$0]  %s266, 8192, %s268, %s254, 256, 256, 16
        $region40: #{tpu_custom_call.1} parent=35 // pred_fallthru
          _
        // Predicated region
        $region41: #{tpu_custom_call.1} parent=35 // pred_check
          %p274 = pneg %p100
        $region42: #{tpu_custom_call.1} parent=35 // pred_check_branch
          %276 = sbr.rel (%p274) target = $region44
        $region43: #{tpu_custom_call.1} parent=35 // pred_region
          %s277 = smul.u32 32, %s26
          %p278 = scmp.lt.s32.totalorder %s277, 63
          %s279 = scalar_select %p278, %s277, 63
          %s280 = smul.addr %s279, 8
          %s281 = scalar_lea.vmem %s2, %s280
          %s282 = smul.u32 32, %s26
        $region44: #{tpu_custom_call.1} parent=35 // pred_fallthru
          _
      $region36: #{tpu_custom_call.1} parent=5 // pred_fallthru
        _
      %p283 = scmp.le.s32.totalorder 1, %s19
      %p284 = scmp.lt.s32.totalorder %s19, 3
      %p285 = pnand %p283, %p284
      %p286 = pneg %p285
      // Predicated region
      $region45: #{tpu_custom_call.1} parent=5 // pred_check
        _
      $region46: #{tpu_custom_call.1} parent=5 // pred_check_branch
        %288 = sbr.rel (%p285) target = $region48
      $region47: #{tpu_custom_call.1} parent=5 // pred_region
        %s289 = ssub.s32 %s19, 1
        %s290 = sand.u32 %s46, 1
        %s291 = scalar_lea.sflag [#allocation4], %s290
        %s292 = sand.u32 %s46, 1
        %s293 = smul.addr %s292, 512
        %s294 = scalar_lea.vmem [#allocation3], %s293
        // Predicated region
        $region49: #{tpu_custom_call.1} parent=47 // pred_check
          %p295 = pneg %p59
        $region50: #{tpu_custom_call.1} parent=47 // pred_check_branch
          %297 = sbr.rel (%p295) target = $region52
        $region51: #{tpu_custom_call.1} parent=47 // pred_region
          %298 = dma.done %s291, 8192
        $region52: #{tpu_custom_call.1} parent=47 // pred_fallthru
          _
        %s299 = sand.u32 %s46, 1
        %s300 = scalar_lea.sflag [#allocation4], %s299
        %s301 = sand.u32 %s46, 1
        %s302 = smul.addr %s301, 512
        %s303 = scalar_lea.vmem [#allocation3], %s302
        %p304 = pneg %p59
        %p305 = pneg %p56
        %p306 = pneg %p80
        %p307 = pneg %p77
        %s308 = smul.u32 32, %s28
        %p309 = scmp.lt.s32.totalorder %s308, 63
        %s310 = scalar_select %p309, %s308, 63
        %s311 = smul.addr %s310, 8
        %s312 = scalar_lea.vmem %s2, %s311
        %p313 = pneg %p106
        %p314 = pneg %p103
        %p315 = pneg %p127
        %p316 = pneg %p124
        %p317 = pneg %p148
        %p318 = pneg %p145
        %p319 = pneg %p169
        %p320 = pneg %p166
        %p321 = pneg %p190
        %p322 = pneg %p187
        %p323 = pneg %p216
        %p324 = pneg %p213
        %s325 = sand.u32 %s203, 1
        %s326 = scalar_lea.sflag [#allocation5], %s325
        %s327 = sand.u32 %s203, 1
        %s328 = smul.addr %s327, 256
        %s329 = scalar_lea.vmem [#allocation6], %s328
        %s330 = smul.u32 32, %s28
        %s331 = smul.u32 4, %s29
        %s332 = smul.u32 32, %s28
        %p333 = scmp.lt.s32.totalorder %s332, 63
        %s334 = scalar_select %p333, %s332, 63
        %s335 = smul.addr %s334, 8
        %s336 = scalar_lea.vmem %s2, %s335
        %s337 = smul.u32 32, %s28
        %s338 = smul.u32 32, %s28
        %s340 = smul.u32 %s29, 512
        %s341 = sshra.s32 %s340, 3
        %s342 = sand.u32 %s340, 7
        %s343 = smul.addr %s341, 4
        %s344 = scalar_lea.vmem %s1, %s343
        %v345 = vld [vmem:[%s344] sm:$0xf]
        %v346 = vld [vmem:[%s344 + $0x4] sm:$0xf]
        %v347 = vld [vmem:[%s344 + $0x8] sm:$0xf]
        %v348 = vld [vmem:[%s344 + $0xc] sm:$0xf]
        %v349 = vld [vmem:[%s344 + $0x10] sm:$0xf]
        %v350 = vld [vmem:[%s344 + $0x14] sm:$0xf]
        %v351 = vld [vmem:[%s344 + $0x18] sm:$0xf]
        %v352 = vld [vmem:[%s344 + $0x1c] sm:$0xf]
        %v353 = vld [vmem:[%s344 + $0x20] sm:$0xf]
        %v354 = vld [vmem:[%s344 + $0x24] sm:$0xf]
        %v355 = vld [vmem:[%s344 + $0x28] sm:$0xf]
        %v356 = vld [vmem:[%s344 + $0x2c] sm:$0xf]
        %v357 = vld [vmem:[%s344 + $0x30] sm:$0xf]
        %v358 = vld [vmem:[%s344 + $0x34] sm:$0xf]
        %v359 = vld [vmem:[%s344 + $0x38] sm:$0xf]
        %v360 = vld [vmem:[%s344 + $0x3c] sm:$0xf]
        %v361 = vld [vmem:[%s344 + $0x40] sm:$0xf]
        %v362 = vld [vmem:[%s344 + $0x44] sm:$0xf]
        %v363 = vld [vmem:[%s344 + $0x48] sm:$0xf]
        %v364 = vld [vmem:[%s344 + $0x4c] sm:$0xf]
        %v365 = vld [vmem:[%s344 + $0x50] sm:$0xf]
        %v366 = vld [vmem:[%s344 + $0x54] sm:$0xf]
        %v367 = vld [vmem:[%s344 + $0x58] sm:$0xf]
        %v368 = vld [vmem:[%s344 + $0x5c] sm:$0xf]
        %v369 = vld [vmem:[%s344 + $0x60] sm:$0xf]
        %v370 = vld [vmem:[%s344 + $0x64] sm:$0xf]
        %v371 = vld [vmem:[%s344 + $0x68] sm:$0xf]
        %v372 = vld [vmem:[%s344 + $0x6c] sm:$0xf]
        %v373 = vld [vmem:[%s344 + $0x70] sm:$0xf]
        %v374 = vld [vmem:[%s344 + $0x74] sm:$0xf]
        %v375 = vld [vmem:[%s344 + $0x78] sm:$0xf]
        %v376 = vld [vmem:[%s344 + $0x7c] sm:$0xf]
        %v377 = vld [vmem:[%s344 + $0x80] sm:$0xf]
        %v378 = vld [vmem:[%s344 + $0x84] sm:$0xf]
        %v379 = vld [vmem:[%s344 + $0x88] sm:$0xf]
        %v380 = vld [vmem:[%s344 + $0x8c] sm:$0xf]
        %v381 = vld [vmem:[%s344 + $0x90] sm:$0xf]
        %v382 = vld [vmem:[%s344 + $0x94] sm:$0xf]
        %v383 = vld [vmem:[%s344 + $0x98] sm:$0xf]
        %v384 = vld [vmem:[%s344 + $0x9c] sm:$0xf]
        %v385 = vld [vmem:[%s344 + $0xa0] sm:$0xf]
        %v386 = vld [vmem:[%s344 + $0xa4] sm:$0xf]
        %v387 = vld [vmem:[%s344 + $0xa8] sm:$0xf]
        %v388 = vld [vmem:[%s344 + $0xac] sm:$0xf]
        %v389 = vld [vmem:[%s344 + $0xb0] sm:$0xf]
        %v390 = vld [vmem:[%s344 + $0xb4] sm:$0xf]
        %v391 = vld [vmem:[%s344 + $0xb8] sm:$0xf]
        %v392 = vld [vmem:[%s344 + $0xbc] sm:$0xf]
        %v393 = vld [vmem:[%s344 + $0xc0] sm:$0xf]
        %v394 = vld [vmem:[%s344 + $0xc4] sm:$0xf]
        %v395 = vld [vmem:[%s344 + $0xc8] sm:$0xf]
        %v396 = vld [vmem:[%s344 + $0xcc] sm:$0xf]
        %v397 = vld [vmem:[%s344 + $0xd0] sm:$0xf]
        %v398 = vld [vmem:[%s344 + $0xd4] sm:$0xf]
        %v399 = vld [vmem:[%s344 + $0xd8] sm:$0xf]
        %v400 = vld [vmem:[%s344 + $0xdc] sm:$0xf]
        %v401 = vld [vmem:[%s344 + $0xe0] sm:$0xf]
        %v402 = vld [vmem:[%s344 + $0xe4] sm:$0xf]
        %v403 = vld [vmem:[%s344 + $0xe8] sm:$0xf]
        %v404 = vld [vmem:[%s344 + $0xec] sm:$0xf]
        %v405 = vld [vmem:[%s344 + $0xf0] sm:$0xf]
        %v406 = vld [vmem:[%s344 + $0xf4] sm:$0xf]
        %v407 = vld [vmem:[%s344 + $0xf8] sm:$0xf]
        %v408 = vld [vmem:[%s344 + $0xfc] sm:$0xf]
        %v409 = vld [vmem:[%s294] sm:$0xff]
        %v410 = vld [vmem:[%s294 + $0x8] sm:$0xff]
        %v411 = vld [vmem:[%s294 + $0x10] sm:$0xff]
        %v412 = vld [vmem:[%s294 + $0x18] sm:$0xff]
        %v413 = vld [vmem:[%s294 + $0x20] sm:$0xff]
        %v414 = vld [vmem:[%s294 + $0x28] sm:$0xff]
        %v415 = vld [vmem:[%s294 + $0x30] sm:$0xff]
        %v416 = vld [vmem:[%s294 + $0x38] sm:$0xff]
        %v417 = vld [vmem:[%s294 + $0x40] sm:$0xff]
        %v418 = vld [vmem:[%s294 + $0x48] sm:$0xff]
        %v419 = vld [vmem:[%s294 + $0x50] sm:$0xff]
        %v420 = vld [vmem:[%s294 + $0x58] sm:$0xff]
        %v421 = vld [vmem:[%s294 + $0x60] sm:$0xff]
        %v422 = vld [vmem:[%s294 + $0x68] sm:$0xff]
        %v423 = vld [vmem:[%s294 + $0x70] sm:$0xff]
        %v424 = vld [vmem:[%s294 + $0x78] sm:$0xff]
        %v425 = vld [vmem:[%s294 + $0x80] sm:$0xff]
        %v426 = vld [vmem:[%s294 + $0x88] sm:$0xff]
        %v427 = vld [vmem:[%s294 + $0x90] sm:$0xff]
        %v428 = vld [vmem:[%s294 + $0x98] sm:$0xff]
        %v429 = vld [vmem:[%s294 + $0xa0] sm:$0xff]
        %v430 = vld [vmem:[%s294 + $0xa8] sm:$0xff]
        %v431 = vld [vmem:[%s294 + $0xb0] sm:$0xff]
        %v432 = vld [vmem:[%s294 + $0xb8] sm:$0xff]
        %v433 = vld [vmem:[%s294 + $0xc0] sm:$0xff]
        %v434 = vld [vmem:[%s294 + $0xc8] sm:$0xff]
        %v435 = vld [vmem:[%s294 + $0xd0] sm:$0xff]
        %v436 = vld [vmem:[%s294 + $0xd8] sm:$0xff]
        %v437 = vld [vmem:[%s294 + $0xe0] sm:$0xff]
        %v438 = vld [vmem:[%s294 + $0xe8] sm:$0xff]
        %v439 = vld [vmem:[%s294 + $0xf0] sm:$0xff]
        %v440 = vld [vmem:[%s294 + $0xf8] sm:$0xff]
        %v441 = vld [vmem:[%s294 + $0x100] sm:$0xff]
        %v442 = vld [vmem:[%s294 + $0x108] sm:$0xff]
        %v443 = vld [vmem:[%s294 + $0x110] sm:$0xff]
        %v444 = vld [vmem:[%s294 + $0x118] sm:$0xff]
        %v445 = vld [vmem:[%s294 + $0x120] sm:$0xff]
        %v446 = vld [vmem:[%s294 + $0x128] sm:$0xff]
        %v447 = vld [vmem:[%s294 + $0x130] sm:$0xff]
        %v448 = vld [vmem:[%s294 + $0x138] sm:$0xff]
        %v449 = vld [vmem:[%s294 + $0x140] sm:$0xff]
        %v450 = vld [vmem:[%s294 + $0x148] sm:$0xff]
        %v451 = vld [vmem:[%s294 + $0x150] sm:$0xff]
        %v452 = vld [vmem:[%s294 + $0x158] sm:$0xff]
        %v453 = vld [vmem:[%s294 + $0x160] sm:$0xff]
        %v454 = vld [vmem:[%s294 + $0x168] sm:$0xff]
        %v455 = vld [vmem:[%s294 + $0x170] sm:$0xff]
        %v456 = vld [vmem:[%s294 + $0x178] sm:$0xff]
        %v457 = vld [vmem:[%s294 + $0x180] sm:$0xff]
        %v458 = vld [vmem:[%s294 + $0x188] sm:$0xff]
        %v459 = vld [vmem:[%s294 + $0x190] sm:$0xff]
        %v460 = vld [vmem:[%s294 + $0x198] sm:$0xff]
        %v461 = vld [vmem:[%s294 + $0x1a0] sm:$0xff]
        %v462 = vld [vmem:[%s294 + $0x1a8] sm:$0xff]
        %v463 = vld [vmem:[%s294 + $0x1b0] sm:$0xff]
        %v464 = vld [vmem:[%s294 + $0x1b8] sm:$0xff]
        %v465 = vld [vmem:[%s294 + $0x1c0] sm:$0xff]
        %v466 = vld [vmem:[%s294 + $0x1c8] sm:$0xff]
        %v467 = vld [vmem:[%s294 + $0x1d0] sm:$0xff]
        %v468 = vld [vmem:[%s294 + $0x1d8] sm:$0xff]
        %v469 = vld [vmem:[%s294 + $0x1e0] sm:$0xff]
        %v470 = vld [vmem:[%s294 + $0x1e8] sm:$0xff]
        %v471 = vld [vmem:[%s294 + $0x1f0] sm:$0xff]
        %v472 = vld [vmem:[%s294 + $0x1f8] sm:$0xff]
        %v537 = vunpack.c.l.b16 %v409
        %v538 = vunpack.c.h.b16 %v409
        %v539 = vunpack.c.l.b16 %v410
        %v540 = vunpack.c.h.b16 %v410
        %v541 = vunpack.c.l.b16 %v411
        %v542 = vunpack.c.h.b16 %v411
        %v543 = vunpack.c.l.b16 %v412
        %v544 = vunpack.c.h.b16 %v412
        %v545 = vunpack.c.l.b16 %v413
        %v546 = vunpack.c.h.b16 %v413
        %v547 = vunpack.c.l.b16 %v414
        %v548 = vunpack.c.h.b16 %v414
        %v549 = vunpack.c.l.b16 %v415
        %v550 = vunpack.c.h.b16 %v415
        %v551 = vunpack.c.l.b16 %v416
        %v552 = vunpack.c.h.b16 %v416
        %v553 = vunpack.c.l.b16 %v417
        %v554 = vunpack.c.h.b16 %v417
        %v555 = vunpack.c.l.b16 %v418
        %v556 = vunpack.c.h.b16 %v418
        %v557 = vunpack.c.l.b16 %v419
        %v558 = vunpack.c.h.b16 %v419
        %v559 = vunpack.c.l.b16 %v420
        %v560 = vunpack.c.h.b16 %v420
        %v561 = vunpack.c.l.b16 %v421
        %v562 = vunpack.c.h.b16 %v421
        %v563 = vunpack.c.l.b16 %v422
        %v564 = vunpack.c.h.b16 %v422
        %v565 = vunpack.c.l.b16 %v423
        %v566 = vunpack.c.h.b16 %v423
        %v567 = vunpack.c.l.b16 %v424
        %v568 = vunpack.c.h.b16 %v424
        %v569 = vunpack.c.l.b16 %v425
        %v570 = vunpack.c.h.b16 %v425
        %v571 = vunpack.c.l.b16 %v426
        %v572 = vunpack.c.h.b16 %v426
        %v573 = vunpack.c.l.b16 %v427
        %v574 = vunpack.c.h.b16 %v427
        %v575 = vunpack.c.l.b16 %v428
        %v576 = vunpack.c.h.b16 %v428
        %v577 = vunpack.c.l.b16 %v429
        %v578 = vunpack.c.h.b16 %v429
        %v579 = vunpack.c.l.b16 %v430
        %v580 = vunpack.c.h.b16 %v430
        %v581 = vunpack.c.l.b16 %v431
        %v582 = vunpack.c.h.b16 %v431
        %v583 = vunpack.c.l.b16 %v432
        %v584 = vunpack.c.h.b16 %v432
        %v585 = vunpack.c.l.b16 %v433
        %v586 = vunpack.c.h.b16 %v433
        %v587 = vunpack.c.l.b16 %v434
        %v588 = vunpack.c.h.b16 %v434
        %v589 = vunpack.c.l.b16 %v435
        %v590 = vunpack.c.h.b16 %v435
        %v591 = vunpack.c.l.b16 %v436
        %v592 = vunpack.c.h.b16 %v436
        %v593 = vunpack.c.l.b16 %v437
        %v594 = vunpack.c.h.b16 %v437
        %v595 = vunpack.c.l.b16 %v438
        %v596 = vunpack.c.h.b16 %v438
        %v597 = vunpack.c.l.b16 %v439
        %v598 = vunpack.c.h.b16 %v439
        %v599 = vunpack.c.l.b16 %v440
        %v600 = vunpack.c.h.b16 %v440
        %v601 = vunpack.c.l.b16 %v441
        %v602 = vunpack.c.h.b16 %v441
        %v603 = vunpack.c.l.b16 %v442
        %v604 = vunpack.c.h.b16 %v442
        %v605 = vunpack.c.l.b16 %v443
        %v606 = vunpack.c.h.b16 %v443
        %v607 = vunpack.c.l.b16 %v444
        %v608 = vunpack.c.h.b16 %v444
        %v609 = vunpack.c.l.b16 %v445
        %v610 = vunpack.c.h.b16 %v445
        %v611 = vunpack.c.l.b16 %v446
        %v612 = vunpack.c.h.b16 %v446
        %v613 = vunpack.c.l.b16 %v447
        %v614 = vunpack.c.h.b16 %v447
        %v615 = vunpack.c.l.b16 %v448
        %v616 = vunpack.c.h.b16 %v448
        %v617 = vunpack.c.l.b16 %v449
        %v618 = vunpack.c.h.b16 %v449
        %v619 = vunpack.c.l.b16 %v450
        %v620 = vunpack.c.h.b16 %v450
        %v621 = vunpack.c.l.b16 %v451
        %v622 = vunpack.c.h.b16 %v451
        %v623 = vunpack.c.l.b16 %v452
        %v624 = vunpack.c.h.b16 %v452
        %v625 = vunpack.c.l.b16 %v453
        %v626 = vunpack.c.h.b16 %v453
        %v627 = vunpack.c.l.b16 %v454
        %v628 = vunpack.c.h.b16 %v454
        %v629 = vunpack.c.l.b16 %v455
        %v630 = vunpack.c.h.b16 %v455
        %v631 = vunpack.c.l.b16 %v456
        %v632 = vunpack.c.h.b16 %v456
        %v633 = vunpack.c.l.b16 %v457
        %v634 = vunpack.c.h.b16 %v457
        %v635 = vunpack.c.l.b16 %v458
        %v636 = vunpack.c.h.b16 %v458
        %v637 = vunpack.c.l.b16 %v459
        %v638 = vunpack.c.h.b16 %v459
        %v639 = vunpack.c.l.b16 %v460
        %v640 = vunpack.c.h.b16 %v460
        %v641 = vunpack.c.l.b16 %v461
        %v642 = vunpack.c.h.b16 %v461
        %v643 = vunpack.c.l.b16 %v462
        %v644 = vunpack.c.h.b16 %v462
        %v645 = vunpack.c.l.b16 %v463
        %v646 = vunpack.c.h.b16 %v463
        %v647 = vunpack.c.l.b16 %v464
        %v648 = vunpack.c.h.b16 %v464
        %v649 = vunpack.c.l.b16 %v465
        %v650 = vunpack.c.h.b16 %v465
        %v651 = vunpack.c.l.b16 %v466
        %v652 = vunpack.c.h.b16 %v466
        %v653 = vunpack.c.l.b16 %v467
        %v654 = vunpack.c.h.b16 %v467
        %v655 = vunpack.c.l.b16 %v468
        %v656 = vunpack.c.h.b16 %v468
        %v657 = vunpack.c.l.b16 %v469
        %v658 = vunpack.c.h.b16 %v469
        %v659 = vunpack.c.l.b16 %v470
        %v660 = vunpack.c.h.b16 %v470
        %v661 = vunpack.c.l.b16 %v471
        %v662 = vunpack.c.h.b16 %v471
        %v663 = vunpack.c.l.b16 %v472
        %v664 = vunpack.c.h.b16 %v472
        %v665 = vpack.c.b16 %v541, %v537
        %v666 = vpack.c.b16 %v542, %v538
        %v667 = vpack.c.b16 %v543, %v539
        %v668 = vpack.c.b16 %v544, %v540
        %v669 = vpack.c.b16 %v549, %v545
        %v670 = vpack.c.b16 %v550, %v546
        %v671 = vpack.c.b16 %v551, %v547
        %v672 = vpack.c.b16 %v552, %v548
        %v673 = vpack.c.b16 %v557, %v553
        %v674 = vpack.c.b16 %v558, %v554
        %v675 = vpack.c.b16 %v559, %v555
        %v676 = vpack.c.b16 %v560, %v556
        %v677 = vpack.c.b16 %v565, %v561
        %v678 = vpack.c.b16 %v566, %v562
        %v679 = vpack.c.b16 %v567, %v563
        %v680 = vpack.c.b16 %v568, %v564
        %v681 = vpack.c.b16 %v573, %v569
        %v682 = vpack.c.b16 %v574, %v570
        %v683 = vpack.c.b16 %v575, %v571
        %v684 = vpack.c.b16 %v576, %v572
        %v685 = vpack.c.b16 %v581, %v577
        %v686 = vpack.c.b16 %v582, %v578
        %v687 = vpack.c.b16 %v583, %v579
        %v688 = vpack.c.b16 %v584, %v580
        %v689 = vpack.c.b16 %v589, %v585
        %v690 = vpack.c.b16 %v590, %v586
        %v691 = vpack.c.b16 %v591, %v587
        %v692 = vpack.c.b16 %v592, %v588
        %v693 = vpack.c.b16 %v597, %v593
        %v694 = vpack.c.b16 %v598, %v594
        %v695 = vpack.c.b16 %v599, %v595
        %v696 = vpack.c.b16 %v600, %v596
        %v697 = vpack.c.b16 %v605, %v601
        %v698 = vpack.c.b16 %v606, %v602
        %v699 = vpack.c.b16 %v607, %v603
        %v700 = vpack.c.b16 %v608, %v604
        %v701 = vpack.c.b16 %v613, %v609
        %v702 = vpack.c.b16 %v614, %v610
        %v703 = vpack.c.b16 %v615, %v611
        %v704 = vpack.c.b16 %v616, %v612
        %v705 = vpack.c.b16 %v621, %v617
        %v706 = vpack.c.b16 %v622, %v618
        %v707 = vpack.c.b16 %v623, %v619
        %v708 = vpack.c.b16 %v624, %v620
        %v709 = vpack.c.b16 %v629, %v625
        %v710 = vpack.c.b16 %v630, %v626
        %v711 = vpack.c.b16 %v631, %v627
        %v712 = vpack.c.b16 %v632, %v628
        %v713 = vpack.c.b16 %v637, %v633
        %v714 = vpack.c.b16 %v638, %v634
        %v715 = vpack.c.b16 %v639, %v635
        %v716 = vpack.c.b16 %v640, %v636
        %v717 = vpack.c.b16 %v645, %v641
        %v718 = vpack.c.b16 %v646, %v642
        %v719 = vpack.c.b16 %v647, %v643
        %v720 = vpack.c.b16 %v648, %v644
        %v721 = vpack.c.b16 %v653, %v649
        %v722 = vpack.c.b16 %v654, %v650
        %v723 = vpack.c.b16 %v655, %v651
        %v724 = vpack.c.b16 %v656, %v652
        %v725 = vpack.c.b16 %v661, %v657
        %v726 = vpack.c.b16 %v662, %v658
        %v727 = vpack.c.b16 %v663, %v659
        %v728 = vpack.c.b16 %v664, %v660
        %v857 = vunpack.c.l.b16 %v345
        %v858 = vunpack.c.l.b16 %v346
        %v859 = vunpack.c.l.b16 %v347
        %v860 = vunpack.c.l.b16 %v348
        %v861 = vunpack.c.l.b16 %v349
        %v862 = vunpack.c.l.b16 %v350
        %v863 = vunpack.c.l.b16 %v351
        %v864 = vunpack.c.l.b16 %v352
        %v865 = vunpack.c.l.b16 %v353
        %v866 = vunpack.c.l.b16 %v354
        %v867 = vunpack.c.l.b16 %v355
        %v868 = vunpack.c.l.b16 %v356
        %v869 = vunpack.c.l.b16 %v357
        %v870 = vunpack.c.l.b16 %v358
        %v871 = vunpack.c.l.b16 %v359
        %v872 = vunpack.c.l.b16 %v360
        %v873 = vunpack.c.l.b16 %v361
        %v874 = vunpack.c.l.b16 %v362
        %v875 = vunpack.c.l.b16 %v363
        %v876 = vunpack.c.l.b16 %v364
        %v877 = vunpack.c.l.b16 %v365
        %v878 = vunpack.c.l.b16 %v366
        %v879 = vunpack.c.l.b16 %v367
        %v880 = vunpack.c.l.b16 %v368
        %v881 = vunpack.c.l.b16 %v369
        %v882 = vunpack.c.l.b16 %v370
        %v883 = vunpack.c.l.b16 %v371
        %v884 = vunpack.c.l.b16 %v372
        %v885 = vunpack.c.l.b16 %v373
        %v886 = vunpack.c.l.b16 %v374
        %v887 = vunpack.c.l.b16 %v375
        %v888 = vunpack.c.l.b16 %v376
        %v889 = vunpack.c.l.b16 %v377
        %v890 = vunpack.c.l.b16 %v378
        %v891 = vunpack.c.l.b16 %v379
        %v892 = vunpack.c.l.b16 %v380
        %v893 = vunpack.c.l.b16 %v381
        %v894 = vunpack.c.l.b16 %v382
        %v895 = vunpack.c.l.b16 %v383
        %v896 = vunpack.c.l.b16 %v384
        %v897 = vunpack.c.l.b16 %v385
        %v898 = vunpack.c.l.b16 %v386
        %v899 = vunpack.c.l.b16 %v387
        %v900 = vunpack.c.l.b16 %v388
        %v901 = vunpack.c.l.b16 %v389
        %v902 = vunpack.c.l.b16 %v390
        %v903 = vunpack.c.l.b16 %v391
        %v904 = vunpack.c.l.b16 %v392
        %v905 = vunpack.c.l.b16 %v393
        %v906 = vunpack.c.l.b16 %v394
        %v907 = vunpack.c.l.b16 %v395
        %v908 = vunpack.c.l.b16 %v396
        %v909 = vunpack.c.l.b16 %v397
        %v910 = vunpack.c.l.b16 %v398
        %v911 = vunpack.c.l.b16 %v399
        %v912 = vunpack.c.l.b16 %v400
        %v913 = vunpack.c.l.b16 %v401
        %v914 = vunpack.c.l.b16 %v402
        %v915 = vunpack.c.l.b16 %v403
        %v916 = vunpack.c.l.b16 %v404
        %v917 = vunpack.c.l.b16 %v405
        %v918 = vunpack.c.l.b16 %v406
        %v919 = vunpack.c.l.b16 %v407
        %v920 = vunpack.c.l.b16 %v408
        %v921 = vpack.c.b16 %v858, %v857
        %v922 = vpack.c.b16 %v860, %v859
        %v923 = vpack.c.b16 %v862, %v861
        %v924 = vpack.c.b16 %v864, %v863
        %v925 = vpack.c.b16 %v866, %v865
        %v926 = vpack.c.b16 %v868, %v867
        %v927 = vpack.c.b16 %v870, %v869
        %v928 = vpack.c.b16 %v872, %v871
        %v929 = vpack.c.b16 %v874, %v873
        %v930 = vpack.c.b16 %v876, %v875
        %v931 = vpack.c.b16 %v878, %v877
        %v932 = vpack.c.b16 %v880, %v879
        %v933 = vpack.c.b16 %v882, %v881
        %v934 = vpack.c.b16 %v884, %v883
        %v935 = vpack.c.b16 %v886, %v885
        %v936 = vpack.c.b16 %v888, %v887
        %v937 = vpack.c.b16 %v890, %v889
        %v938 = vpack.c.b16 %v892, %v891
        %v939 = vpack.c.b16 %v894, %v893
        %v940 = vpack.c.b16 %v896, %v895
        %v941 = vpack.c.b16 %v898, %v897
        %v942 = vpack.c.b16 %v900, %v899
        %v943 = vpack.c.b16 %v902, %v901
        %v944 = vpack.c.b16 %v904, %v903
        %v945 = vpack.c.b16 %v906, %v905
        %v946 = vpack.c.b16 %v908, %v907
        %v947 = vpack.c.b16 %v910, %v909
        %v948 = vpack.c.b16 %v912, %v911
        %v949 = vpack.c.b16 %v914, %v913
        %v950 = vpack.c.b16 %v916, %v915
        %v951 = vpack.c.b16 %v918, %v917
        %v952 = vpack.c.b16 %v920, %v919
        %985 = vmatprep.subr.bf16.mxu0 0
        %986 = vmatpush1.bf16.msra.mxu0 %v921
        %987 = vmatprep.subr.bf16.mxu0 0
        %988 = vmatpush1.bf16.msra.mxu0 %v922
        %989 = vmatprep.subr.bf16.mxu0 0
        %990 = vmatpush1.bf16.msra.mxu0 %v923
        %991 = vmatprep.subr.bf16.mxu0 0
        %992 = vmatpush1.bf16.msra.mxu0 %v924
        %993 = vmatprep.subr.bf16.mxu0 0
        %994 = vmatpush1.bf16.msra.mxu0 %v925
        %995 = vmatprep.subr.bf16.mxu0 0
        %996 = vmatpush1.bf16.msra.mxu0 %v926
        %997 = vmatprep.subr.bf16.mxu0 0
        %998 = vmatpush1.bf16.msra.mxu0 %v927
        %999 = vmatprep.subr.bf16.mxu0 0
        %1000 = vmatpush1.bf16.msra.mxu0 %v928
        %1001 = vmatprep.subr.bf16.mxu0 0
        %1002 = vmatpush1.bf16.msra.mxu0 %v929
        %1003 = vmatprep.subr.bf16.mxu0 0
        %1004 = vmatpush1.bf16.msra.mxu0 %v930
        %1005 = vmatprep.subr.bf16.mxu0 0
        %1006 = vmatpush1.bf16.msra.mxu0 %v931
        %1007 = vmatprep.subr.bf16.mxu0 0
        %1008 = vmatpush1.bf16.msra.mxu0 %v932
        %1009 = vmatprep.subr.bf16.mxu0 0
        %1010 = vmatpush1.bf16.msra.mxu0 %v933
        %1011 = vmatprep.subr.bf16.mxu0 0
        %1012 = vmatpush1.bf16.msra.mxu0 %v934
        %1013 = vmatprep.subr.bf16.mxu0 0
        %1014 = vmatpush1.bf16.msra.mxu0 %v935
        %1015 = vmatprep.subr.bf16.mxu0 0
        %1016 = vmatpush1.bf16.msra.mxu0 %v936
        %1017 = vmatprep.mubr.bf16.mxu0 %v666
        %1018 = vmatmul.mubr.bf16.gmra.mrb[0].mxu0 %v665
        %v1019 = vpop.f32.mrb[0].mxu0
        %v1020 = vadd.f32 0.0, %v1019
        %v1021 = vpop.f32.mrb[0].mxu0
        %v1022 = vpop.f32.mrb[0].mxu0
        %v1023 = vadd.f32 0.0, %v1022
        %v1024 = vpop.f32.mrb[0].mxu0
        %1025 = vmatprep.mubr.bf16.mxu0 %v670
        %1026 = vmatmul.mubr.bf16.gmra.mrb[0].mxu0 %v669
        %v1027 = vpop.f32.mrb[0].mxu0
        %v1028 = vadd.f32 0.0, %v1027
        %v1029 = vpop.f32.mrb[0].mxu0
        %v1030 = vpop.f32.mrb[0].mxu0
        %v1031 = vadd.f32 0.0, %v1030
        %v1032 = vpop.f32.mrb[0].mxu0
        %1033 = vmatprep.mubr.bf16.mxu0 %v674
        %1034 = vmatmul.mubr.bf16.gmra.mrb[0].mxu0 %v673
        %v1035 = vpop.f32.mrb[0].mxu0
        %v1036 = vadd.f32 0.0, %v1035
        %v1037 = vpop.f32.mrb[0].mxu0
        %v1038 = vpop.f32.mrb[0].mxu0
        %v1039 = vadd.f32 0.0, %v1038
        %v1040 = vpop.f32.mrb[0].mxu0
        %1041 = vmatprep.mubr.bf16.mxu0 %v678
        %1042 = vmatmul.mubr.bf16.gmra.mrb[0].mxu0 %v677
        %v1043 = vpop.f32.mrb[0].mxu0
        %v1044 = vadd.f32 0.0, %v1043
        %v1045 = vpop.f32.mrb[0].mxu0
        %v1046 = vpop.f32.mrb[0].mxu0
        %v1047 = vadd.f32 0.0, %v1046
        %v1048 = vpop.f32.mrb[0].mxu0
        %1049 = vmatprep.mubr.bf16.mxu0 %v682
        %1050 = vmatmul.mubr.bf16.gmra.mrb[0].mxu0 %v681
        %v1051 = vpop.f32.mrb[0].mxu0
        %v1052 = vadd.f32 0.0, %v1051
        %v1053 = vpop.f32.mrb[0].mxu0
        %v1054 = vpop.f32.mrb[0].mxu0
        %v1055 = vadd.f32 0.0, %v1054
        %v1056 = vpop.f32.mrb[0].mxu0
        %1057 = vmatprep.mubr.bf16.mxu0 %v686
        %1058 = vmatmul.mubr.bf16.gmra.mrb[0].mxu0 %v685
        %v1059 = vpop.f32.mrb[0].mxu0
        %v1060 = vadd.f32 0.0, %v1059
        %v1061 = vpop.f32.mrb[0].mxu0
        %v1062 = vpop.f32.mrb[0].mxu0
        %v1063 = vadd.f32 0.0, %v1062
        %v1064 = vpop.f32.mrb[0].mxu0
        %1065 = vmatprep.mubr.bf16.mxu0 %v690
        %1066 = vmatmul.mubr.bf16.gmra.mrb[0].mxu0 %v689
        %v1067 = vpop.f32.mrb[0].mxu0
        %v1068 = vadd.f32 0.0, %v1067
        %v1069 = vpop.f32.mrb[0].mxu0
        %v1070 = vpop.f32.mrb[0].mxu0
        %v1071 = vadd.f32 0.0, %v1070
        %v1072 = vpop.f32.mrb[0].mxu0
        %1073 = vmatprep.mubr.bf16.mxu0 %v694
        %1074 = vmatmul.mubr.bf16.gmra.mrb[0].mxu0 %v693
        %v1075 = vpop.f32.mrb[0].mxu0
        %v1076 = vadd.f32 0.0, %v1075
        %v1077 = vpop.f32.mrb[0].mxu0
        %v1078 = vpop.f32.mrb[0].mxu0
        %v1079 = vadd.f32 0.0, %v1078
        %v1080 = vpop.f32.mrb[0].mxu0
        %1081 = vmatprep.mubr.bf16.mxu0 %v698
        %1082 = vmatmul.mubr.bf16.gmra.mrb[0].mxu0 %v697
        %v1083 = vpop.f32.mrb[0].mxu0
        %v1084 = vadd.f32 0.0, %v1083
        %v1085 = vpop.f32.mrb[0].mxu0
        %v1086 = vpop.f32.mrb[0].mxu0
        %v1087 = vadd.f32 0.0, %v1086
        %v1088 = vpop.f32.mrb[0].mxu0
        %1089 = vmatprep.mubr.bf16.mxu0 %v702
        %1090 = vmatmul.mubr.bf16.gmra.mrb[0].mxu0 %v701
        %v1091 = vpop.f32.mrb[0].mxu0
        %v1092 = vadd.f32 0.0, %v1091
        %v1093 = vpop.f32.mrb[0].mxu0
        %v1094 = vpop.f32.mrb[0].mxu0
        %v1095 = vadd.f32 0.0, %v1094
        %v1096 = vpop.f32.mrb[0].mxu0
        %1097 = vmatprep.mubr.bf16.mxu0 %v706
        %1098 = vmatmul.mubr.bf16.gmra.mrb[0].mxu0 %v705
        %v1099 = vpop.f32.mrb[0].mxu0
        %v1100 = vadd.f32 0.0, %v1099
        %v1101 = vpop.f32.mrb[0].mxu0
        %v1102 = vpop.f32.mrb[0].mxu0
        %v1103 = vadd.f32 0.0, %v1102
        %v1104 = vpop.f32.mrb[0].mxu0
        %1105 = vmatprep.mubr.bf16.mxu0 %v710
        %1106 = vmatmul.mubr.bf16.gmra.mrb[0].mxu0 %v709
        %v1107 = vpop.f32.mrb[0].mxu0
        %v1108 = vadd.f32 0.0, %v1107
        %v1109 = vpop.f32.mrb[0].mxu0
        %v1110 = vpop.f32.mrb[0].mxu0
        %v1111 = vadd.f32 0.0, %v1110
        %v1112 = vpop.f32.mrb[0].mxu0
        %1113 = vmatprep.mubr.bf16.mxu0 %v714
        %1114 = vmatmul.mubr.bf16.gmra.mrb[0].mxu0 %v713
        %v1115 = vpop.f32.mrb[0].mxu0
        %v1116 = vadd.f32 0.0, %v1115
        %v1117 = vpop.f32.mrb[0].mxu0
        %v1118 = vpop.f32.mrb[0].mxu0
        %v1119 = vadd.f32 0.0, %v1118
        %v1120 = vpop.f32.mrb[0].mxu0
        %1121 = vmatprep.mubr.bf16.mxu0 %v718
        %1122 = vmatmul.mubr.bf16.gmra.mrb[0].mxu0 %v717
        %v1123 = vpop.f32.mrb[0].mxu0
        %v1124 = vadd.f32 0.0, %v1123
        %v1125 = vpop.f32.mrb[0].mxu0
        %v1126 = vpop.f32.mrb[0].mxu0
        %v1127 = vadd.f32 0.0, %v1126
        %v1128 = vpop.f32.mrb[0].mxu0
        %1129 = vmatprep.mubr.bf16.mxu0 %v722
        %1130 = vmatmul.mubr.bf16.gmra.mrb[0].mxu0 %v721
        %v1131 = vpop.f32.mrb[0].mxu0
        %v1132 = vadd.f32 0.0, %v1131
        %v1133 = vpop.f32.mrb[0].mxu0
        %v1134 = vpop.f32.mrb[0].mxu0
        %v1135 = vadd.f32 0.0, %v1134
        %v1136 = vpop.f32.mrb[0].mxu0
        %1137 = vmatprep.mubr.bf16.mxu0 %v726
        %1138 = vmatmul.mubr.bf16.gmra.mrb[0].mxu0 %v725
        %v1139 = vpop.f32.mrb[0].mxu0
        %v1140 = vadd.f32 0.0, %v1139
        %v1141 = vpop.f32.mrb[0].mxu0
        %v1142 = vpop.f32.mrb[0].mxu0
        %v1143 = vadd.f32 0.0, %v1142
        %v1144 = vpop.f32.mrb[0].mxu0
        %1145 = vdwg.mxu0
        %1146 = vmatprep.subr.bf16.mxu0 0
        %1147 = vmatpush1.bf16.msra.mxu0 %v937
        %1148 = vmatprep.subr.bf16.mxu0 0
        %1149 = vmatpush1.bf16.msra.mxu0 %v938
        %1150 = vmatprep.subr.bf16.mxu0 0
        %1151 = vmatpush1.bf16.msra.mxu0 %v939
        %1152 = vmatprep.subr.bf16.mxu0 0
        %1153 = vmatpush1.bf16.msra.mxu0 %v940
        %1154 = vmatprep.subr.bf16.mxu0 0
        %1155 = vmatpush1.bf16.msra.mxu0 %v941
        %1156 = vmatprep.subr.bf16.mxu0 0
        %1157 = vmatpush1.bf16.msra.mxu0 %v942
        %1158 = vmatprep.subr.bf16.mxu0 0
        %1159 = vmatpush1.bf16.msra.mxu0 %v943
        %1160 = vmatprep.subr.bf16.mxu0 0
        %1161 = vmatpush1.bf16.msra.mxu0 %v944
        %1162 = vmatprep.subr.bf16.mxu0 0
        %1163 = vmatpush1.bf16.msra.mxu0 %v945
        %1164 = vmatprep.subr.bf16.mxu0 0
        %1165 = vmatpush1.bf16.msra.mxu0 %v946
        %1166 = vmatprep.subr.bf16.mxu0 0
        %1167 = vmatpush1.bf16.msra.mxu0 %v947
        %1168 = vmatprep.subr.bf16.mxu0 0
        %1169 = vmatpush1.bf16.msra.mxu0 %v948
        %1170 = vmatprep.subr.bf16.mxu0 0
        %1171 = vmatpush1.bf16.msra.mxu0 %v949
        %1172 = vmatprep.subr.bf16.mxu0 0
        %1173 = vmatpush1.bf16.msra.mxu0 %v950
        %1174 = vmatprep.subr.bf16.mxu0 0
        %1175 = vmatpush1.bf16.msra.mxu0 %v951
        %1176 = vmatprep.subr.bf16.mxu0 0
        %1177 = vmatpush1.bf16.msra.mxu0 %v952
        %1178 = vmatprep.mubr.bf16.mxu0 %v668
        %1179 = vmatmul.mubr.bf16.gmra.mrb[0].mxu0 %v667
        %v1180 = vpop.f32.mrb[0].mxu0
        %v1181 = vadd.f32 %v1020, %v1180
        %v1182 = vpop.f32.mrb[0].mxu0
        %v1183 = vpop.f32.mrb[0].mxu0
        %v1184 = vadd.f32 %v1023, %v1183
        %v1185 = vpop.f32.mrb[0].mxu0
        %1186 = vmatprep.mubr.bf16.mxu0 %v672
        %1187 = vmatmul.mubr.bf16.gmra.mrb[0].mxu0 %v671
        %v1188 = vpop.f32.mrb[0].mxu0
        %v1189 = vadd.f32 %v1028, %v1188
        %v1190 = vpop.f32.mrb[0].mxu0
        %v1191 = vpop.f32.mrb[0].mxu0
        %v1192 = vadd.f32 %v1031, %v1191
        %v1193 = vpop.f32.mrb[0].mxu0
        %1194 = vmatprep.mubr.bf16.mxu0 %v676
        %1195 = vmatmul.mubr.bf16.gmra.mrb[0].mxu0 %v675
        %v1196 = vpop.f32.mrb[0].mxu0
        %v1197 = vadd.f32 %v1036, %v1196
        %v1198 = vpop.f32.mrb[0].mxu0
        %v1199 = vpop.f32.mrb[0].mxu0
        %v1200 = vadd.f32 %v1039, %v1199
        %v1201 = vpop.f32.mrb[0].mxu0
        %1202 = vmatprep.mubr.bf16.mxu0 %v680
        %1203 = vmatmul.mubr.bf16.gmra.mrb[0].mxu0 %v679
        %v1204 = vpop.f32.mrb[0].mxu0
        %v1205 = vadd.f32 %v1044, %v1204
        %v1206 = vpop.f32.mrb[0].mxu0
        %v1207 = vpop.f32.mrb[0].mxu0
        %v1208 = vadd.f32 %v1047, %v1207
        %v1209 = vpop.f32.mrb[0].mxu0
        %1210 = vmatprep.mubr.bf16.mxu0 %v684
        %1211 = vmatmul.mubr.bf16.gmra.mrb[0].mxu0 %v683
        %v1212 = vpop.f32.mrb[0].mxu0
        %v1213 = vadd.f32 %v1052, %v1212
        %v1214 = vpop.f32.mrb[0].mxu0
        %v1215 = vpop.f32.mrb[0].mxu0
        %v1216 = vadd.f32 %v1055, %v1215
        %v1217 = vpop.f32.mrb[0].mxu0
        %1218 = vmatprep.mubr.bf16.mxu0 %v688
        %1219 = vmatmul.mubr.bf16.gmra.mrb[0].mxu0 %v687
        %v1220 = vpop.f32.mrb[0].mxu0
        %v1221 = vadd.f32 %v1060, %v1220
        %v1222 = vpop.f32.mrb[0].mxu0
        %v1223 = vpop.f32.mrb[0].mxu0
        %v1224 = vadd.f32 %v1063, %v1223
        %v1225 = vpop.f32.mrb[0].mxu0
        %1226 = vmatprep.mubr.bf16.mxu0 %v692
        %1227 = vmatmul.mubr.bf16.gmra.mrb[0].mxu0 %v691
        %v1228 = vpop.f32.mrb[0].mxu0
        %v1229 = vadd.f32 %v1068, %v1228
        %v1230 = vpop.f32.mrb[0].mxu0
        %v1231 = vpop.f32.mrb[0].mxu0
        %v1232 = vadd.f32 %v1071, %v1231
        %v1233 = vpop.f32.mrb[0].mxu0
        %1234 = vmatprep.mubr.bf16.mxu0 %v696
        %1235 = vmatmul.mubr.bf16.gmra.mrb[0].mxu0 %v695
        %v1236 = vpop.f32.mrb[0].mxu0
        %v1237 = vadd.f32 %v1076, %v1236
        %v1238 = vpop.f32.mrb[0].mxu0
        %v1239 = vpop.f32.mrb[0].mxu0
        %v1240 = vadd.f32 %v1079, %v1239
        %v1241 = vpop.f32.mrb[0].mxu0
        %1242 = vmatprep.mubr.bf16.mxu0 %v700
        %1243 = vmatmul.mubr.bf16.gmra.mrb[0].mxu0 %v699
        %v1244 = vpop.f32.mrb[0].mxu0
        %v1245 = vadd.f32 %v1084, %v1244
        %v1246 = vpop.f32.mrb[0].mxu0
        %v1247 = vpop.f32.mrb[0].mxu0
        %v1248 = vadd.f32 %v1087, %v1247
        %v1249 = vpop.f32.mrb[0].mxu0
        %1250 = vmatprep.mubr.bf16.mxu0 %v704
        %1251 = vmatmul.mubr.bf16.gmra.mrb[0].mxu0 %v703
        %v1252 = vpop.f32.mrb[0].mxu0
        %v1253 = vadd.f32 %v1092, %v1252
        %v1254 = vpop.f32.mrb[0].mxu0
        %v1255 = vpop.f32.mrb[0].mxu0
        %v1256 = vadd.f32 %v1095, %v1255
        %v1257 = vpop.f32.mrb[0].mxu0
        %1258 = vmatprep.mubr.bf16.mxu0 %v708
        %1259 = vmatmul.mubr.bf16.gmra.mrb[0].mxu0 %v707
        %v1260 = vpop.f32.mrb[0].mxu0
        %v1261 = vadd.f32 %v1100, %v1260
        %v1262 = vpop.f32.mrb[0].mxu0
        %v1263 = vpop.f32.mrb[0].mxu0
        %v1264 = vadd.f32 %v1103, %v1263
        %v1265 = vpop.f32.mrb[0].mxu0
        %1266 = vmatprep.mubr.bf16.mxu0 %v712
        %1267 = vmatmul.mubr.bf16.gmra.mrb[0].mxu0 %v711
        %v1268 = vpop.f32.mrb[0].mxu0
        %v1269 = vadd.f32 %v1108, %v1268
        %v1270 = vpop.f32.mrb[0].mxu0
        %v1271 = vpop.f32.mrb[0].mxu0
        %v1272 = vadd.f32 %v1111, %v1271
        %v1273 = vpop.f32.mrb[0].mxu0
        %1274 = vmatprep.mubr.bf16.mxu0 %v716
        %1275 = vmatmul.mubr.bf16.gmra.mrb[0].mxu0 %v715
        %v1276 = vpop.f32.mrb[0].mxu0
        %v1277 = vadd.f32 %v1116, %v1276
        %v1278 = vpop.f32.mrb[0].mxu0
        %v1279 = vpop.f32.mrb[0].mxu0
        %v1280 = vadd.f32 %v1119, %v1279
        %v1281 = vpop.f32.mrb[0].mxu0
        %1282 = vmatprep.mubr.bf16.mxu0 %v720
        %1283 = vmatmul.mubr.bf16.gmra.mrb[0].mxu0 %v719
        %v1284 = vpop.f32.mrb[0].mxu0
        %v1285 = vadd.f32 %v1124, %v1284
        %v1286 = vpop.f32.mrb[0].mxu0
        %v1287 = vpop.f32.mrb[0].mxu0
        %v1288 = vadd.f32 %v1127, %v1287
        %v1289 = vpop.f32.mrb[0].mxu0
        %1290 = vmatprep.mubr.bf16.mxu0 %v724
        %1291 = vmatmul.mubr.bf16.gmra.mrb[0].mxu0 %v723
        %v1292 = vpop.f32.mrb[0].mxu0
        %v1293 = vadd.f32 %v1132, %v1292
        %v1294 = vpop.f32.mrb[0].mxu0
        %v1295 = vpop.f32.mrb[0].mxu0
        %v1296 = vadd.f32 %v1135, %v1295
        %v1297 = vpop.f32.mrb[0].mxu0
        %1298 = vmatprep.mubr.bf16.mxu0 %v728
        %1299 = vmatmul.mubr.bf16.gmra.mrb[0].mxu0 %v727
        %v1300 = vpop.f32.mrb[0].mxu0
        %v1301 = vadd.f32 %v1140, %v1300
        %v1302 = vpop.f32.mrb[0].mxu0
        %v1303 = vpop.f32.mrb[0].mxu0
        %v1304 = vadd.f32 %v1143, %v1303
        %v1305 = vpop.f32.mrb[0].mxu0
        %1306 = vdwg.mxu0
        %p1307 = scmp.eq.s32.totalorder %s29, 0
        // Predicated region
        $region53: #{tpu_custom_call.1} parent=47 // pred_check
          %p1308 = pneg %p1307
        $region54: #{tpu_custom_call.1} parent=47 // pred_check_branch
          %1310 = sbr.rel (%p1308) target = $region56
        $region55: #{tpu_custom_call.1} parent=47 // pred_region
          %1311 = vst [vmem:[#allocation2] sm:$0xff] %v1181
          %1312 = vst [vmem:[#allocation2 + $0x8] sm:$0xff] %v1184
          %1313 = vst [vmem:[#allocation2 + $0x10] sm:$0xff] %v1189
          %1314 = vst [vmem:[#allocation2 + $0x18] sm:$0xff] %v1192
          %1315 = vst [vmem:[#allocation2 + $0x20] sm:$0xff] %v1197
          %1316 = vst [vmem:[#allocation2 + $0x28] sm:$0xff] %v1200
          %1317 = vst [vmem:[#allocation2 + $0x30] sm:$0xff] %v1205
          %1318 = vst [vmem:[#allocation2 + $0x38] sm:$0xff] %v1208
          %1319 = vst [vmem:[#allocation2 + $0x40] sm:$0xff] %v1213
          %1320 = vst [vmem:[#allocation2 + $0x48] sm:$0xff] %v1216
          %1321 = vst [vmem:[#allocation2 + $0x50] sm:$0xff] %v1221
          %1322 = vst [vmem:[#allocation2 + $0x58] sm:$0xff] %v1224
          %1323 = vst [vmem:[#allocation2 + $0x60] sm:$0xff] %v1229
          %1324 = vst [vmem:[#allocation2 + $0x68] sm:$0xff] %v1232
          %1325 = vst [vmem:[#allocation2 + $0x70] sm:$0xff] %v1237
          %1326 = vst [vmem:[#allocation2 + $0x78] sm:$0xff] %v1240
          %1327 = vst [vmem:[#allocation2 + $0x80] sm:$0xff] %v1245
          %1328 = vst [vmem:[#allocation2 + $0x88] sm:$0xff] %v1248
          %1329 = vst [vmem:[#allocation2 + $0x90] sm:$0xff] %v1253
          %1330 = vst [vmem:[#allocation2 + $0x98] sm:$0xff] %v1256
          %1331 = vst [vmem:[#allocation2 + $0xa0] sm:$0xff] %v1261
          %1332 = vst [vmem:[#allocation2 + $0xa8] sm:$0xff] %v1264
          %1333 = vst [vmem:[#allocation2 + $0xb0] sm:$0xff] %v1269
          %1334 = vst [vmem:[#allocation2 + $0xb8] sm:$0xff] %v1272
          %1335 = vst [vmem:[#allocation2 + $0xc0] sm:$0xff] %v1277
          %1336 = vst [vmem:[#allocation2 + $0xc8] sm:$0xff] %v1280
          %1337 = vst [vmem:[#allocation2 + $0xd0] sm:$0xff] %v1285
          %1338 = vst [vmem:[#allocation2 + $0xd8] sm:$0xff] %v1288
          %1339 = vst [vmem:[#allocation2 + $0xe0] sm:$0xff] %v1293
          %1340 = vst [vmem:[#allocation2 + $0xe8] sm:$0xff] %v1296
          %1341 = vst [vmem:[#allocation2 + $0xf0] sm:$0xff] %v1301
          %1342 = vst [vmem:[#allocation2 + $0xf8] sm:$0xff] %v1304
        $region56: #{tpu_custom_call.1} parent=47 // pred_fallthru
          _
        %p1343 = scmp.gt.s32.totalorder %s29, 0
        // Predicated region
        $region57: #{tpu_custom_call.1} parent=47 // pred_check
          %p1344 = pneg %p1343
        $region58: #{tpu_custom_call.1} parent=47 // pred_check_branch
          %1346 = sbr.rel (%p1344) target = $region60
        $region59: #{tpu_custom_call.1} parent=47 // pred_region
          %v1347 = vld [vmem:[#allocation2] sm:$0xff]
          %v1348 = vld [vmem:[#allocation2 + $0x8] sm:$0xff]
          %v1349 = vld [vmem:[#allocation2 + $0x10] sm:$0xff]
          %v1350 = vld [vmem:[#allocation2 + $0x18] sm:$0xff]
          %v1351 = vld [vmem:[#allocation2 + $0x20] sm:$0xff]
          %v1352 = vld [vmem:[#allocation2 + $0x28] sm:$0xff]
          %v1353 = vld [vmem:[#allocation2 + $0x30] sm:$0xff]
          %v1354 = vld [vmem:[#allocation2 + $0x38] sm:$0xff]
          %v1355 = vld [vmem:[#allocation2 + $0x40] sm:$0xff]
          %v1356 = vld [vmem:[#allocation2 + $0x48] sm:$0xff]
          %v1357 = vld [vmem:[#allocation2 + $0x50] sm:$0xff]
          %v1358 = vld [vmem:[#allocation2 + $0x58] sm:$0xff]
          %v1359 = vld [vmem:[#allocation2 + $0x60] sm:$0xff]
          %v1360 = vld [vmem:[#allocation2 + $0x68] sm:$0xff]
          %v1361 = vld [vmem:[#allocation2 + $0x70] sm:$0xff]
          %v1362 = vld [vmem:[#allocation2 + $0x78] sm:$0xff]
          %v1363 = vld [vmem:[#allocation2 + $0x80] sm:$0xff]
          %v1364 = vld [vmem:[#allocation2 + $0x88] sm:$0xff]
          %v1365 = vld [vmem:[#allocation2 + $0x90] sm:$0xff]
          %v1366 = vld [vmem:[#allocation2 + $0x98] sm:$0xff]
          %v1367 = vld [vmem:[#allocation2 + $0xa0] sm:$0xff]
          %v1368 = vld [vmem:[#allocation2 + $0xa8] sm:$0xff]
          %v1369 = vld [vmem:[#allocation2 + $0xb0] sm:$0xff]
          %v1370 = vld [vmem:[#allocation2 + $0xb8] sm:$0xff]
          %v1371 = vld [vmem:[#allocation2 + $0xc0] sm:$0xff]
          %v1372 = vld [vmem:[#allocation2 + $0xc8] sm:$0xff]
          %v1373 = vld [vmem:[#allocation2 + $0xd0] sm:$0xff]
          %v1374 = vld [vmem:[#allocation2 + $0xd8] sm:$0xff]
          %v1375 = vld [vmem:[#allocation2 + $0xe0] sm:$0xff]
          %v1376 = vld [vmem:[#allocation2 + $0xe8] sm:$0xff]
          %v1377 = vld [vmem:[#allocation2 + $0xf0] sm:$0xff]
          %v1378 = vld [vmem:[#allocation2 + $0xf8] sm:$0xff]
          %v1379 = vadd.f32 %v1347, %v1181
          %v1380 = vadd.f32 %v1348, %v1184
          %v1381 = vadd.f32 %v1349, %v1189
          %v1382 = vadd.f32 %v1350, %v1192
          %v1383 = vadd.f32 %v1351, %v1197
          %v1384 = vadd.f32 %v1352, %v1200
          %v1385 = vadd.f32 %v1353, %v1205
          %v1386 = vadd.f32 %v1354, %v1208
          %v1387 = vadd.f32 %v1355, %v1213
          %v1388 = vadd.f32 %v1356, %v1216
          %v1389 = vadd.f32 %v1357, %v1221
          %v1390 = vadd.f32 %v1358, %v1224
          %v1391 = vadd.f32 %v1359, %v1229
          %v1392 = vadd.f32 %v1360, %v1232
          %v1393 = vadd.f32 %v1361, %v1237
          %v1394 = vadd.f32 %v1362, %v1240
          %v1395 = vadd.f32 %v1363, %v1245
          %v1396 = vadd.f32 %v1364, %v1248
          %v1397 = vadd.f32 %v1365, %v1253
          %v1398 = vadd.f32 %v1366, %v1256
          %v1399 = vadd.f32 %v1367, %v1261
          %v1400 = vadd.f32 %v1368, %v1264
          %v1401 = vadd.f32 %v1369, %v1269
          %v1402 = vadd.f32 %v1370, %v1272
          %v1403 = vadd.f32 %v1371, %v1277
          %v1404 = vadd.f32 %v1372, %v1280
          %v1405 = vadd.f32 %v1373, %v1285
          %v1406 = vadd.f32 %v1374, %v1288
          %v1407 = vadd.f32 %v1375, %v1293
          %v1408 = vadd.f32 %v1376, %v1296
          %v1409 = vadd.f32 %v1377, %v1301
          %v1410 = vadd.f32 %v1378, %v1304
          %1411 = vst [vmem:[#allocation2] sm:$0xff] %v1379
          %1412 = vst [vmem:[#allocation2 + $0x8] sm:$0xff] %v1380
          %1413 = vst [vmem:[#allocation2 + $0x10] sm:$0xff] %v1381
          %1414 = vst [vmem:[#allocation2 + $0x18] sm:$0xff] %v1382
          %1415 = vst [vmem:[#allocation2 + $0x20] sm:$0xff] %v1383
          %1416 = vst [vmem:[#allocation2 + $0x28] sm:$0xff] %v1384
          %1417 = vst [vmem:[#allocation2 + $0x30] sm:$0xff] %v1385
          %1418 = vst [vmem:[#allocation2 + $0x38] sm:$0xff] %v1386
          %1419 = vst [vmem:[#allocation2 + $0x40] sm:$0xff] %v1387
          %1420 = vst [vmem:[#allocation2 + $0x48] sm:$0xff] %v1388
          %1421 = vst [vmem:[#allocation2 + $0x50] sm:$0xff] %v1389
          %1422 = vst [vmem:[#allocation2 + $0x58] sm:$0xff] %v1390
          %1423 = vst [vmem:[#allocation2 + $0x60] sm:$0xff] %v1391
          %1424 = vst [vmem:[#allocation2 + $0x68] sm:$0xff] %v1392
          %1425 = vst [vmem:[#allocation2 + $0x70] sm:$0xff] %v1393
          %1426 = vst [vmem:[#allocation2 + $0x78] sm:$0xff] %v1394
          %1427 = vst [vmem:[#allocation2 + $0x80] sm:$0xff] %v1395
          %1428 = vst [vmem:[#allocation2 + $0x88] sm:$0xff] %v1396
          %1429 = vst [vmem:[#allocation2 + $0x90] sm:$0xff] %v1397
          %1430 = vst [vmem:[#allocation2 + $0x98] sm:$0xff] %v1398
          %1431 = vst [vmem:[#allocation2 + $0xa0] sm:$0xff] %v1399
          %1432 = vst [vmem:[#allocation2 + $0xa8] sm:$0xff] %v1400
          %1433 = vst [vmem:[#allocation2 + $0xb0] sm:$0xff] %v1401
          %1434 = vst [vmem:[#allocation2 + $0xb8] sm:$0xff] %v1402
          %1435 = vst [vmem:[#allocation2 + $0xc0] sm:$0xff] %v1403
          %1436 = vst [vmem:[#allocation2 + $0xc8] sm:$0xff] %v1404
          %1437 = vst [vmem:[#allocation2 + $0xd0] sm:$0xff] %v1405
          %1438 = vst [vmem:[#allocation2 + $0xd8] sm:$0xff] %v1406
          %1439 = vst [vmem:[#allocation2 + $0xe0] sm:$0xff] %v1407
          %1440 = vst [vmem:[#allocation2 + $0xe8] sm:$0xff] %v1408
          %1441 = vst [vmem:[#allocation2 + $0xf0] sm:$0xff] %v1409
          %1442 = vst [vmem:[#allocation2 + $0xf8] sm:$0xff] %v1410
        $region60: #{tpu_custom_call.1} parent=47 // pred_fallthru
          _
        // Predicated region
        $region61: #{tpu_custom_call.1} parent=47 // pred_check
          %p1443 = pneg %p1307
        $region62: #{tpu_custom_call.1} parent=47 // pred_check_branch
          %1445 = sbr.rel (%p1443) target = $region64
        $region63: #{tpu_custom_call.1} parent=47 // pred_region
          %v1446 = vld [vmem:[%s336] sm:$0xff]
          %v1447 = vld [vmem:[%s336 + $0x8] sm:$0xff]
          %v1448 = vld [vmem:[%s336 + $0x10] sm:$0xff]
          %v1449 = vld [vmem:[%s336 + $0x18] sm:$0xff]
          %v1450 = vld [vmem:[%s336 + $0x20] sm:$0xff]
          %v1451 = vld [vmem:[%s336 + $0x28] sm:$0xff]
          %v1452 = vld [vmem:[%s336 + $0x30] sm:$0xff]
          %v1453 = vld [vmem:[%s336 + $0x38] sm:$0xff]
          %v1454 = vld [vmem:[%s336 + $0x40] sm:$0xff]
          %v1455 = vld [vmem:[%s336 + $0x48] sm:$0xff]
          %v1456 = vld [vmem:[%s336 + $0x50] sm:$0xff]
          %v1457 = vld [vmem:[%s336 + $0x58] sm:$0xff]
          %v1458 = vld [vmem:[%s336 + $0x60] sm:$0xff]
          %v1459 = vld [vmem:[%s336 + $0x68] sm:$0xff]
          %v1460 = vld [vmem:[%s336 + $0x70] sm:$0xff]
          %v1461 = vld [vmem:[%s336 + $0x78] sm:$0xff]
          %v1462 = vld [vmem:[%s336 + $0x80] sm:$0xff]
          %v1463 = vld [vmem:[%s336 + $0x88] sm:$0xff]
          %v1464 = vld [vmem:[%s336 + $0x90] sm:$0xff]
          %v1465 = vld [vmem:[%s336 + $0x98] sm:$0xff]
          %v1466 = vld [vmem:[%s336 + $0xa0] sm:$0xff]
          %v1467 = vld [vmem:[%s336 + $0xa8] sm:$0xff]
          %v1468 = vld [vmem:[%s336 + $0xb0] sm:$0xff]
          %v1469 = vld [vmem:[%s336 + $0xb8] sm:$0xff]
          %v1470 = vld [vmem:[%s336 + $0xc0] sm:$0xff]
          %v1471 = vld [vmem:[%s336 + $0xc8] sm:$0xff]
          %v1472 = vld [vmem:[%s336 + $0xd0] sm:$0xff]
          %v1473 = vld [vmem:[%s336 + $0xd8] sm:$0xff]
          %v1474 = vld [vmem:[%s336 + $0xe0] sm:$0xff]
          %v1475 = vld [vmem:[%s336 + $0xe8] sm:$0xff]
          %v1476 = vld [vmem:[%s336 + $0xf0] sm:$0xff]
          %v1477 = vld [vmem:[%s336 + $0xf8] sm:$0xff]
          %v1478 = vld [vmem:[#allocation2] sm:$0xff]
          %v1479 = vld [vmem:[#allocation2 + $0x8] sm:$0xff]
          %v1480 = vld [vmem:[#allocation2 + $0x10] sm:$0xff]
          %v1481 = vld [vmem:[#allocation2 + $0x18] sm:$0xff]
          %v1482 = vld [vmem:[#allocation2 + $0x20] sm:$0xff]
          %v1483 = vld [vmem:[#allocation2 + $0x28] sm:$0xff]
          %v1484 = vld [vmem:[#allocation2 + $0x30] sm:$0xff]
          %v1485 = vld [vmem:[#allocation2 + $0x38] sm:$0xff]
          %v1486 = vld [vmem:[#allocation2 + $0x40] sm:$0xff]
          %v1487 = vld [vmem:[#allocation2 + $0x48] sm:$0xff]
          %v1488 = vld [vmem:[#allocation2 + $0x50] sm:$0xff]
          %v1489 = vld [vmem:[#allocation2 + $0x58] sm:$0xff]
          %v1490 = vld [vmem:[#allocation2 + $0x60] sm:$0xff]
          %v1491 = vld [vmem:[#allocation2 + $0x68] sm:$0xff]
          %v1492 = vld [vmem:[#allocation2 + $0x70] sm:$0xff]
          %v1493 = vld [vmem:[#allocation2 + $0x78] sm:$0xff]
          %v1494 = vld [vmem:[#allocation2 + $0x80] sm:$0xff]
          %v1495 = vld [vmem:[#allocation2 + $0x88] sm:$0xff]
          %v1496 = vld [vmem:[#allocation2 + $0x90] sm:$0xff]
          %v1497 = vld [vmem:[#allocation2 + $0x98] sm:$0xff]
          %v1498 = vld [vmem:[#allocation2 + $0xa0] sm:$0xff]
          %v1499 = vld [vmem:[#allocation2 + $0xa8] sm:$0xff]
          %v1500 = vld [vmem:[#allocation2 + $0xb0] sm:$0xff]
          %v1501 = vld [vmem:[#allocation2 + $0xb8] sm:$0xff]
          %v1502 = vld [vmem:[#allocation2 + $0xc0] sm:$0xff]
          %v1503 = vld [vmem:[#allocation2 + $0xc8] sm:$0xff]
          %v1504 = vld [vmem:[#allocation2 + $0xd0] sm:$0xff]
          %v1505 = vld [vmem:[#allocation2 + $0xd8] sm:$0xff]
          %v1506 = vld [vmem:[#allocation2 + $0xe0] sm:$0xff]
          %v1507 = vld [vmem:[#allocation2 + $0xe8] sm:$0xff]
          %v1508 = vld [vmem:[#allocation2 + $0xf0] sm:$0xff]
          %v1509 = vld [vmem:[#allocation2 + $0xf8] sm:$0xff]
          %1511 = vset.pattern.permute.xlu0 0
          %1512 = vperm.xlu0 %1511, %v1446
          %v1513 = vpop.permute.xlu0 %1512
          %1516 = vset.pattern.permute.xlu0 0
          %1517 = vperm.xlu0 %1516, %v1447
          %v1518 = vpop.permute.xlu0 %1517
          %1521 = vset.pattern.permute.xlu0 0
          %1522 = vperm.xlu0 %1521, %v1448
          %v1523 = vpop.permute.xlu0 %1522
          %1526 = vset.pattern.permute.xlu0 0
          %1527 = vperm.xlu0 %1526, %v1449
          %v1528 = vpop.permute.xlu0 %1527
          %1531 = vset.pattern.permute.xlu0 0
          %1532 = vperm.xlu0 %1531, %v1450
          %v1533 = vpop.permute.xlu0 %1532
          %1536 = vset.pattern.permute.xlu0 0
          %1537 = vperm.xlu0 %1536, %v1451
          %v1538 = vpop.permute.xlu0 %1537
          %1541 = vset.pattern.permute.xlu0 0
          %1542 = vperm.xlu0 %1541, %v1452
          %v1543 = vpop.permute.xlu0 %1542
          %1546 = vset.pattern.permute.xlu0 0
          %1547 = vperm.xlu0 %1546, %v1453
          %v1548 = vpop.permute.xlu0 %1547
          %1551 = vset.pattern.permute.xlu0 0
          %1552 = vperm.xlu0 %1551, %v1454
          %v1553 = vpop.permute.xlu0 %1552
          %1556 = vset.pattern.permute.xlu0 0
          %1557 = vperm.xlu0 %1556, %v1455
          %v1558 = vpop.permute.xlu0 %1557
          %1561 = vset.pattern.permute.xlu0 0
          %1562 = vperm.xlu0 %1561, %v1456
          %v1563 = vpop.permute.xlu0 %1562
          %1566 = vset.pattern.permute.xlu0 0
          %1567 = vperm.xlu0 %1566, %v1457
          %v1568 = vpop.permute.xlu0 %1567
          %1571 = vset.pattern.permute.xlu0 0
          %1572 = vperm.xlu0 %1571, %v1458
          %v1573 = vpop.permute.xlu0 %1572
          %1576 = vset.pattern.permute.xlu0 0
          %1577 = vperm.xlu0 %1576, %v1459
          %v1578 = vpop.permute.xlu0 %1577
          %1581 = vset.pattern.permute.xlu0 0
          %1582 = vperm.xlu0 %1581, %v1460
          %v1583 = vpop.permute.xlu0 %1582
          %1586 = vset.pattern.permute.xlu0 0
          %1587 = vperm.xlu0 %1586, %v1461
          %v1588 = vpop.permute.xlu0 %1587
          %1591 = vset.pattern.permute.xlu0 0
          %1592 = vperm.xlu0 %1591, %v1462
          %v1593 = vpop.permute.xlu0 %1592
          %1596 = vset.pattern.permute.xlu0 0
          %1597 = vperm.xlu0 %1596, %v1463
          %v1598 = vpop.permute.xlu0 %1597
          %1601 = vset.pattern.permute.xlu0 0
          %1602 = vperm.xlu0 %1601, %v1464
          %v1603 = vpop.permute.xlu0 %1602
          %1606 = vset.pattern.permute.xlu0 0
          %1607 = vperm.xlu0 %1606, %v1465
          %v1608 = vpop.permute.xlu0 %1607
          %1611 = vset.pattern.permute.xlu0 0
          %1612 = vperm.xlu0 %1611, %v1466
          %v1613 = vpop.permute.xlu0 %1612
          %1616 = vset.pattern.permute.xlu0 0
          %1617 = vperm.xlu0 %1616, %v1467
          %v1618 = vpop.permute.xlu0 %1617
          %1621 = vset.pattern.permute.xlu0 0
          %1622 = vperm.xlu0 %1621, %v1468
          %v1623 = vpop.permute.xlu0 %1622
          %1626 = vset.pattern.permute.xlu0 0
          %1627 = vperm.xlu0 %1626, %v1469
          %v1628 = vpop.permute.xlu0 %1627
          %1631 = vset.pattern.permute.xlu0 0
          %1632 = vperm.xlu0 %1631, %v1470
          %v1633 = vpop.permute.xlu0 %1632
          %1636 = vset.pattern.permute.xlu0 0
          %1637 = vperm.xlu0 %1636, %v1471
          %v1638 = vpop.permute.xlu0 %1637
          %1641 = vset.pattern.permute.xlu0 0
          %1642 = vperm.xlu0 %1641, %v1472
          %v1643 = vpop.permute.xlu0 %1642
          %1646 = vset.pattern.permute.xlu0 0
          %1647 = vperm.xlu0 %1646, %v1473
          %v1648 = vpop.permute.xlu0 %1647
          %1651 = vset.pattern.permute.xlu0 0
          %1652 = vperm.xlu0 %1651, %v1474
          %v1653 = vpop.permute.xlu0 %1652
          %1656 = vset.pattern.permute.xlu0 0
          %1657 = vperm.xlu0 %1656, %v1475
          %v1658 = vpop.permute.xlu0 %1657
          %1661 = vset.pattern.permute.xlu0 0
          %1662 = vperm.xlu0 %1661, %v1476
          %v1663 = vpop.permute.xlu0 %1662
          %1666 = vset.pattern.permute.xlu0 0
          %1667 = vperm.xlu0 %1666, %v1477
          %v1668 = vpop.permute.xlu0 %1667
          %v1670 = vmul.f32 %v1513, %v1478
          %v1671 = vmul.f32 %v1518, %v1479
          %v1672 = vmul.f32 %v1523, %v1480
          %v1673 = vmul.f32 %v1528, %v1481
          %v1674 = vmul.f32 %v1533, %v1482
          %v1675 = vmul.f32 %v1538, %v1483
          %v1676 = vmul.f32 %v1543, %v1484
          %v1677 = vmul.f32 %v1548, %v1485
          %v1678 = vmul.f32 %v1553, %v1486
          %v1679 = vmul.f32 %v1558, %v1487
          %v1680 = vmul.f32 %v1563, %v1488
          %v1681 = vmul.f32 %v1568, %v1489
          %v1682 = vmul.f32 %v1573, %v1490
          %v1683 = vmul.f32 %v1578, %v1491
          %v1684 = vmul.f32 %v1583, %v1492
          %v1685 = vmul.f32 %v1588, %v1493
          %v1686 = vmul.f32 %v1593, %v1494
          %v1687 = vmul.f32 %v1598, %v1495
          %v1688 = vmul.f32 %v1603, %v1496
          %v1689 = vmul.f32 %v1608, %v1497
          %v1690 = vmul.f32 %v1613, %v1498
          %v1691 = vmul.f32 %v1618, %v1499
          %v1692 = vmul.f32 %v1623, %v1500
          %v1693 = vmul.f32 %v1628, %v1501
          %v1694 = vmul.f32 %v1633, %v1502
          %v1695 = vmul.f32 %v1638, %v1503
          %v1696 = vmul.f32 %v1643, %v1504
          %v1697 = vmul.f32 %v1648, %v1505
          %v1698 = vmul.f32 %v1653, %v1506
          %v1699 = vmul.f32 %v1658, %v1507
          %v1700 = vmul.f32 %v1663, %v1508
          %v1701 = vmul.f32 %v1668, %v1509
          %v1702 = vld [vmem:[%s3] sm:$0xff]
          %v1703 = vld [vmem:[%s3 + $0x8] sm:$0xff]
          %v1704 = vld [vmem:[%s3 + $0x10] sm:$0xff]
          %v1705 = vld [vmem:[%s3 + $0x18] sm:$0xff]
          %v1706 = vld [vmem:[%s3 + $0x20] sm:$0xff]
          %v1707 = vld [vmem:[%s3 + $0x28] sm:$0xff]
          %v1708 = vld [vmem:[%s3 + $0x30] sm:$0xff]
          %v1709 = vld [vmem:[%s3 + $0x38] sm:$0xff]
          %v1710 = vld [vmem:[%s3 + $0x40] sm:$0xff]
          %v1711 = vld [vmem:[%s3 + $0x48] sm:$0xff]
          %v1712 = vld [vmem:[%s3 + $0x50] sm:$0xff]
          %v1713 = vld [vmem:[%s3 + $0x58] sm:$0xff]
          %v1714 = vld [vmem:[%s3 + $0x60] sm:$0xff]
          %v1715 = vld [vmem:[%s3 + $0x68] sm:$0xff]
          %v1716 = vld [vmem:[%s3 + $0x70] sm:$0xff]
          %v1717 = vld [vmem:[%s3 + $0x78] sm:$0xff]
          %v1718 = vld [vmem:[%s4] sm:$0x1]
          %v1720 = vlaneseq
          %v1721 = vshrl.u32 %v1720, 7
          %v1722 = vsub.s32 0, %v1721
          %v1723 = vrot.slane %v1718, %v1722
          %1725 = vmatprep.subr.mxu0 0.0
          %1726 = vmatpush1.msra.mxu0 %v1702
          %1727 = vmatprep.subr.mxu0 0.0
          %1728 = vmatpush1.msra.mxu0 %v1703
          %1729 = vmatprep.subr.mxu0 0.0
          %1730 = vmatpush1.msra.mxu0 %v1704
          %1731 = vmatprep.subr.mxu0 0.0
          %1732 = vmatpush1.msra.mxu0 %v1705
          %1733 = vmatprep.subr.mxu0 0.0
          %1734 = vmatpush1.msra.mxu0 %v1706
          %1735 = vmatprep.subr.mxu0 0.0
          %1736 = vmatpush1.msra.mxu0 %v1707
          %1737 = vmatprep.subr.mxu0 0.0
          %1738 = vmatpush1.msra.mxu0 %v1708
          %1739 = vmatprep.subr.mxu0 0.0
          %1740 = vmatpush1.msra.mxu0 %v1709
          %1741 = vmatprep.subr.mxu0 0.0
          %1742 = vmatpush1.msra.mxu0 %v1710
          %1743 = vmatprep.subr.mxu0 0.0
          %1744 = vmatpush1.msra.mxu0 %v1711
          %1745 = vmatprep.subr.mxu0 0.0
          %1746 = vmatpush1.msra.mxu0 %v1712
          %1747 = vmatprep.subr.mxu0 0.0
          %1748 = vmatpush1.msra.mxu0 %v1713
          %1749 = vmatprep.subr.mxu0 0.0
          %1750 = vmatpush1.msra.mxu0 %v1714
          %1751 = vmatprep.subr.mxu0 0.0
          %1752 = vmatpush1.msra.mxu0 %v1715
          %1753 = vmatprep.subr.mxu0 0.0
          %1754 = vmatpush1.msra.mxu0 %v1716
          %1755 = vmatprep.subr.mxu0 0.0
          %1756 = vmatpush1.msra.mxu0 %v1717
          %1757 = vmatprep.subr.mxu0 0.0
          %1758 = vmatpush1.msra.mxu0 0.0
          %1759 = vmatprep.subr.mxu0 0.0
          %1760 = vmatpush1.msra.mxu0 0.0
          %1761 = vmatprep.subr.mxu0 0.0
          %1762 = vmatpush1.msra.mxu0 0.0
          %1763 = vmatprep.subr.mxu0 0.0
          %1764 = vmatpush1.msra.mxu0 0.0
          %1765 = vmatprep.subr.mxu0 0.0
          %1766 = vmatpush1.msra.mxu0 0.0
          %1767 = vmatprep.subr.mxu0 0.0
          %1768 = vmatpush1.msra.mxu0 0.0
          %1769 = vmatprep.subr.mxu0 0.0
          %1770 = vmatpush1.msra.mxu0 0.0
          %1771 = vmatprep.subr.mxu0 0.0
          %1772 = vmatpush1.msra.mxu0 0.0
          %1773 = vmatprep.subr.mxu0 0.0
          %1774 = vmatpush1.msra.mxu0 0.0
          %1775 = vmatprep.subr.mxu0 0.0
          %1776 = vmatpush1.msra.mxu0 0.0
          %1777 = vmatprep.subr.mxu0 0.0
          %1778 = vmatpush1.msra.mxu0 0.0
          %1779 = vmatprep.subr.mxu0 0.0
          %1780 = vmatpush1.msra.mxu0 0.0
          %1781 = vmatprep.subr.mxu0 0.0
          %1782 = vmatpush1.msra.mxu0 0.0
          %1783 = vmatprep.subr.mxu0 0.0
          %1784 = vmatpush1.msra.mxu0 0.0
          %1785 = vmatprep.subr.mxu0 0.0
          %1786 = vmatpush1.msra.mxu0 0.0
          %1787 = vmatprep.subr.mxu0 0.0
          %1788 = vmatpush1.msra.mxu0 0.0
          %1789 = vmatprep.mubr.f32.mxu0 0.0
          %1790 = vmatmul.mubr.f32.gmra.mrb[0].mxu0 %v1670
          %v1791 = vpop.f32.mrb[0].mxu0
          %v1792 = vadd.f32 %v1723, %v1791
          %v1793 = vpop.f32.mrb[0].mxu0
          %1794 = vmatprep.mubr.f32.mxu0 0.0
          %1795 = vmatmul.mubr.f32.gmra.mrb[0].mxu0 %v1671
          %v1796 = vpop.f32.mrb[0].mxu0
          %v1797 = vadd.f32 %v1723, %v1796
          %v1798 = vpop.f32.mrb[0].mxu0
          %1799 = vmatprep.mubr.f32.mxu0 0.0
          %1800 = vmatmul.mubr.f32.gmra.mrb[0].mxu0 %v1672
          %v1801 = vpop.f32.mrb[0].mxu0
          %v1802 = vadd.f32 %v1723, %v1801
          %v1803 = vpop.f32.mrb[0].mxu0
          %1804 = vmatprep.mubr.f32.mxu0 0.0
          %1805 = vmatmul.mubr.f32.gmra.mrb[0].mxu0 %v1673
          %v1806 = vpop.f32.mrb[0].mxu0
          %v1807 = vadd.f32 %v1723, %v1806
          %v1808 = vpop.f32.mrb[0].mxu0
          %1809 = vmatprep.mubr.f32.mxu0 0.0
          %1810 = vmatmul.mubr.f32.gmra.mrb[0].mxu0 %v1674
          %v1811 = vpop.f32.mrb[0].mxu0
          %v1812 = vadd.f32 %v1723, %v1811
          %v1813 = vpop.f32.mrb[0].mxu0
          %1814 = vmatprep.mubr.f32.mxu0 0.0
          %1815 = vmatmul.mubr.f32.gmra.mrb[0].mxu0 %v1675
          %v1816 = vpop.f32.mrb[0].mxu0
          %v1817 = vadd.f32 %v1723, %v1816
          %v1818 = vpop.f32.mrb[0].mxu0
          %1819 = vmatprep.mubr.f32.mxu0 0.0
          %1820 = vmatmul.mubr.f32.gmra.mrb[0].mxu0 %v1676
          %v1821 = vpop.f32.mrb[0].mxu0
          %v1822 = vadd.f32 %v1723, %v1821
          %v1823 = vpop.f32.mrb[0].mxu0
          %1824 = vmatprep.mubr.f32.mxu0 0.0
          %1825 = vmatmul.mubr.f32.gmra.mrb[0].mxu0 %v1677
          %v1826 = vpop.f32.mrb[0].mxu0
          %v1827 = vadd.f32 %v1723, %v1826
          %v1828 = vpop.f32.mrb[0].mxu0
          %1829 = vmatprep.mubr.f32.mxu0 0.0
          %1830 = vmatmul.mubr.f32.gmra.mrb[0].mxu0 %v1678
          %v1831 = vpop.f32.mrb[0].mxu0
          %v1832 = vadd.f32 %v1723, %v1831
          %v1833 = vpop.f32.mrb[0].mxu0
          %1834 = vmatprep.mubr.f32.mxu0 0.0
          %1835 = vmatmul.mubr.f32.gmra.mrb[0].mxu0 %v1679
          %v1836 = vpop.f32.mrb[0].mxu0
          %v1837 = vadd.f32 %v1723, %v1836
          %v1838 = vpop.f32.mrb[0].mxu0
          %1839 = vmatprep.mubr.f32.mxu0 0.0
          %1840 = vmatmul.mubr.f32.gmra.mrb[0].mxu0 %v1680
          %v1841 = vpop.f32.mrb[0].mxu0
          %v1842 = vadd.f32 %v1723, %v1841
          %v1843 = vpop.f32.mrb[0].mxu0
          %1844 = vmatprep.mubr.f32.mxu0 0.0
          %1845 = vmatmul.mubr.f32.gmra.mrb[0].mxu0 %v1681
          %v1846 = vpop.f32.mrb[0].mxu0
          %v1847 = vadd.f32 %v1723, %v1846
          %v1848 = vpop.f32.mrb[0].mxu0
          %1849 = vmatprep.mubr.f32.mxu0 0.0
          %1850 = vmatmul.mubr.f32.gmra.mrb[0].mxu0 %v1682
          %v1851 = vpop.f32.mrb[0].mxu0
          %v1852 = vadd.f32 %v1723, %v1851
          %v1853 = vpop.f32.mrb[0].mxu0
          %1854 = vmatprep.mubr.f32.mxu0 0.0
          %1855 = vmatmul.mubr.f32.gmra.mrb[0].mxu0 %v1683
          %v1856 = vpop.f32.mrb[0].mxu0
          %v1857 = vadd.f32 %v1723, %v1856
          %v1858 = vpop.f32.mrb[0].mxu0
          %1859 = vmatprep.mubr.f32.mxu0 0.0
          %1860 = vmatmul.mubr.f32.gmra.mrb[0].mxu0 %v1684
          %v1861 = vpop.f32.mrb[0].mxu0
          %v1862 = vadd.f32 %v1723, %v1861
          %v1863 = vpop.f32.mrb[0].mxu0
          %1864 = vmatprep.mubr.f32.mxu0 0.0
          %1865 = vmatmul.mubr.f32.gmra.mrb[0].mxu0 %v1685
          %v1866 = vpop.f32.mrb[0].mxu0
          %v1867 = vadd.f32 %v1723, %v1866
          %v1868 = vpop.f32.mrb[0].mxu0
          %1869 = vmatprep.mubr.f32.mxu0 0.0
          %1870 = vmatmul.mubr.f32.gmra.mrb[0].mxu0 %v1686
          %v1871 = vpop.f32.mrb[0].mxu0
          %v1872 = vadd.f32 %v1723, %v1871
          %v1873 = vpop.f32.mrb[0].mxu0
          %1874 = vmatprep.mubr.f32.mxu0 0.0
          %1875 = vmatmul.mubr.f32.gmra.mrb[0].mxu0 %v1687
          %v1876 = vpop.f32.mrb[0].mxu0
          %v1877 = vadd.f32 %v1723, %v1876
          %v1878 = vpop.f32.mrb[0].mxu0
          %1879 = vmatprep.mubr.f32.mxu0 0.0
          %1880 = vmatmul.mubr.f32.gmra.mrb[0].mxu0 %v1688
          %v1881 = vpop.f32.mrb[0].mxu0
          %v1882 = vadd.f32 %v1723, %v1881
          %v1883 = vpop.f32.mrb[0].mxu0
          %1884 = vmatprep.mubr.f32.mxu0 0.0
          %1885 = vmatmul.mubr.f32.gmra.mrb[0].mxu0 %v1689
          %v1886 = vpop.f32.mrb[0].mxu0
          %v1887 = vadd.f32 %v1723, %v1886
          %v1888 = vpop.f32.mrb[0].mxu0
          %1889 = vmatprep.mubr.f32.mxu0 0.0
          %1890 = vmatmul.mubr.f32.gmra.mrb[0].mxu0 %v1690
          %v1891 = vpop.f32.mrb[0].mxu0
          %v1892 = vadd.f32 %v1723, %v1891
          %v1893 = vpop.f32.mrb[0].mxu0
          %1894 = vmatprep.mubr.f32.mxu0 0.0
          %1895 = vmatmul.mubr.f32.gmra.mrb[0].mxu0 %v1691
          %v1896 = vpop.f32.mrb[0].mxu0
          %v1897 = vadd.f32 %v1723, %v1896
          %v1898 = vpop.f32.mrb[0].mxu0
          %1899 = vmatprep.mubr.f32.mxu0 0.0
          %1900 = vmatmul.mubr.f32.gmra.mrb[0].mxu0 %v1692
          %v1901 = vpop.f32.mrb[0].mxu0
          %v1902 = vadd.f32 %v1723, %v1901
          %v1903 = vpop.f32.mrb[0].mxu0
          %1904 = vmatprep.mubr.f32.mxu0 0.0
          %1905 = vmatmul.mubr.f32.gmra.mrb[0].mxu0 %v1693
          %v1906 = vpop.f32.mrb[0].mxu0
          %v1907 = vadd.f32 %v1723, %v1906
          %v1908 = vpop.f32.mrb[0].mxu0
          %1909 = vmatprep.mubr.f32.mxu0 0.0
          %1910 = vmatmul.mubr.f32.gmra.mrb[0].mxu0 %v1694
          %v1911 = vpop.f32.mrb[0].mxu0
          %v1912 = vadd.f32 %v1723, %v1911
          %v1913 = vpop.f32.mrb[0].mxu0
          %1914 = vmatprep.mubr.f32.mxu0 0.0
          %1915 = vmatmul.mubr.f32.gmra.mrb[0].mxu0 %v1695
          %v1916 = vpop.f32.mrb[0].mxu0
          %v1917 = vadd.f32 %v1723, %v1916
          %v1918 = vpop.f32.mrb[0].mxu0
          %1919 = vmatprep.mubr.f32.mxu0 0.0
          %1920 = vmatmul.mubr.f32.gmra.mrb[0].mxu0 %v1696
          %v1921 = vpop.f32.mrb[0].mxu0
          %v1922 = vadd.f32 %v1723, %v1921
          %v1923 = vpop.f32.mrb[0].mxu0
          %1924 = vmatprep.mubr.f32.mxu0 0.0
          %1925 = vmatmul.mubr.f32.gmra.mrb[0].mxu0 %v1697
          %v1926 = vpop.f32.mrb[0].mxu0
          %v1927 = vadd.f32 %v1723, %v1926
          %v1928 = vpop.f32.mrb[0].mxu0
          %1929 = vmatprep.mubr.f32.mxu0 0.0
          %1930 = vmatmul.mubr.f32.gmra.mrb[0].mxu0 %v1698
          %v1931 = vpop.f32.mrb[0].mxu0
          %v1932 = vadd.f32 %v1723, %v1931
          %v1933 = vpop.f32.mrb[0].mxu0
          %1934 = vmatprep.mubr.f32.mxu0 0.0
          %1935 = vmatmul.mubr.f32.gmra.mrb[0].mxu0 %v1699
          %v1936 = vpop.f32.mrb[0].mxu0
          %v1937 = vadd.f32 %v1723, %v1936
          %v1938 = vpop.f32.mrb[0].mxu0
          %1939 = vmatprep.mubr.f32.mxu0 0.0
          %1940 = vmatmul.mubr.f32.gmra.mrb[0].mxu0 %v1700
          %v1941 = vpop.f32.mrb[0].mxu0
          %v1942 = vadd.f32 %v1723, %v1941
          %v1943 = vpop.f32.mrb[0].mxu0
          %1944 = vmatprep.mubr.f32.mxu0 0.0
          %1945 = vmatmul.mubr.f32.gmra.mrb[0].mxu0 %v1701
          %v1946 = vpop.f32.mrb[0].mxu0
          %v1947 = vadd.f32 %v1723, %v1946
          %v1948 = vpop.f32.mrb[0].mxu0
          %1949 = vdwg.mxu0
          %v1950 = vmax.f32 %v1792, 0.0
          %v1951 = vmax.f32 %v1797, 0.0
          %v1952 = vmax.f32 %v1802, 0.0
          %v1953 = vmax.f32 %v1807, 0.0
          %v1954 = vmax.f32 %v1812, 0.0
          %v1955 = vmax.f32 %v1817, 0.0
          %v1956 = vmax.f32 %v1822, 0.0
          %v1957 = vmax.f32 %v1827, 0.0
          %v1958 = vmax.f32 %v1832, 0.0
          %v1959 = vmax.f32 %v1837, 0.0
          %v1960 = vmax.f32 %v1842, 0.0
          %v1961 = vmax.f32 %v1847, 0.0
          %v1962 = vmax.f32 %v1852, 0.0
          %v1963 = vmax.f32 %v1857, 0.0
          %v1964 = vmax.f32 %v1862, 0.0
          %v1965 = vmax.f32 %v1867, 0.0
          %v1966 = vmax.f32 %v1872, 0.0
          %v1967 = vmax.f32 %v1877, 0.0
          %v1968 = vmax.f32 %v1882, 0.0
          %v1969 = vmax.f32 %v1887, 0.0
          %v1970 = vmax.f32 %v1892, 0.0
          %v1971 = vmax.f32 %v1897, 0.0
          %v1972 = vmax.f32 %v1902, 0.0
          %v1973 = vmax.f32 %v1907, 0.0
          %v1974 = vmax.f32 %v1912, 0.0
          %v1975 = vmax.f32 %v1917, 0.0
          %v1976 = vmax.f32 %v1922, 0.0
          %v1977 = vmax.f32 %v1927, 0.0
          %v1978 = vmax.f32 %v1932, 0.0
          %v1979 = vmax.f32 %v1937, 0.0
          %v1980 = vmax.f32 %v1942, 0.0
          %v1981 = vmax.f32 %v1947, 0.0
          %v1982 = vld [vmem:[%s5] sm:$0xff]
          %v1983 = vld [vmem:[%s5 + $0x8] sm:$0xff]
          %v1984 = vld [vmem:[%s5 + $0x10] sm:$0xff]
          %v1985 = vld [vmem:[%s5 + $0x18] sm:$0xff]
          %v1986 = vld [vmem:[%s5 + $0x20] sm:$0xff]
          %v1987 = vld [vmem:[%s5 + $0x28] sm:$0xff]
          %v1988 = vld [vmem:[%s5 + $0x30] sm:$0xff]
          %v1989 = vld [vmem:[%s5 + $0x38] sm:$0xff]
          %v1990 = vld [vmem:[%s5 + $0x40] sm:$0xff]
          %v1991 = vld [vmem:[%s5 + $0x48] sm:$0xff]
          %v1992 = vld [vmem:[%s5 + $0x50] sm:$0xff]
          %v1993 = vld [vmem:[%s5 + $0x58] sm:$0xff]
          %v1994 = vld [vmem:[%s5 + $0x60] sm:$0xff]
          %v1995 = vld [vmem:[%s5 + $0x68] sm:$0xff]
          %v1996 = vld [vmem:[%s5 + $0x70] sm:$0xff]
          %v1997 = vld [vmem:[%s5 + $0x78] sm:$0xff]
          %v1998 = vld [vmem:[%s6] sm:$0x1]
          %v2000 = vlaneseq
          %v2001 = vshrl.u32 %v2000, 7
          %v2002 = vsub.s32 0, %v2001
          %v2003 = vrot.slane %v1998, %v2002
          %2005 = vmatprep.subr.mxu0 0.0
          %2006 = vmatpush1.msra.mxu0 %v1982
          %2007 = vmatprep.subr.mxu0 0.0
          %2008 = vmatpush1.msra.mxu0 %v1983
          %2009 = vmatprep.subr.mxu0 0.0
          %2010 = vmatpush1.msra.mxu0 %v1984
          %2011 = vmatprep.subr.mxu0 0.0
          %2012 = vmatpush1.msra.mxu0 %v1985
          %2013 = vmatprep.subr.mxu0 0.0
          %2014 = vmatpush1.msra.mxu0 %v1986
          %2015 = vmatprep.subr.mxu0 0.0
          %2016 = vmatpush1.msra.mxu0 %v1987
          %2017 = vmatprep.subr.mxu0 0.0
          %2018 = vmatpush1.msra.mxu0 %v1988
          %2019 = vmatprep.subr.mxu0 0.0
          %2020 = vmatpush1.msra.mxu0 %v1989
          %2021 = vmatprep.subr.mxu0 0.0
          %2022 = vmatpush1.msra.mxu0 %v1990
          %2023 = vmatprep.subr.mxu0 0.0
          %2024 = vmatpush1.msra.mxu0 %v1991
          %2025 = vmatprep.subr.mxu0 0.0
          %2026 = vmatpush1.msra.mxu0 %v1992
          %2027 = vmatprep.subr.mxu0 0.0
          %2028 = vmatpush1.msra.mxu0 %v1993
          %2029 = vmatprep.subr.mxu0 0.0
          %2030 = vmatpush1.msra.mxu0 %v1994
          %2031 = vmatprep.subr.mxu0 0.0
          %2032 = vmatpush1.msra.mxu0 %v1995
          %2033 = vmatprep.subr.mxu0 0.0
          %2034 = vmatpush1.msra.mxu0 %v1996
          %2035 = vmatprep.subr.mxu0 0.0
          %2036 = vmatpush1.msra.mxu0 %v1997
          %2037 = vmatprep.subr.mxu0 0.0
          %2038 = vmatpush1.msra.mxu0 0.0
          %2039 = vmatprep.subr.mxu0 0.0
          %2040 = vmatpush1.msra.mxu0 0.0
          %2041 = vmatprep.subr.mxu0 0.0
          %2042 = vmatpush1.msra.mxu0 0.0
          %2043 = vmatprep.subr.mxu0 0.0
          %2044 = vmatpush1.msra.mxu0 0.0
          %2045 = vmatprep.subr.mxu0 0.0
          %2046 = vmatpush1.msra.mxu0 0.0
          %2047 = vmatprep.subr.mxu0 0.0
          %2048 = vmatpush1.msra.mxu0 0.0
          %2049 = vmatprep.subr.mxu0 0.0
          %2050 = vmatpush1.msra.mxu0 0.0
          %2051 = vmatprep.subr.mxu0 0.0
          %2052 = vmatpush1.msra.mxu0 0.0
          %2053 = vmatprep.subr.mxu0 0.0
          %2054 = vmatpush1.msra.mxu0 0.0
          %2055 = vmatprep.subr.mxu0 0.0
          %2056 = vmatpush1.msra.mxu0 0.0
          %2057 = vmatprep.subr.mxu0 0.0
          %2058 = vmatpush1.msra.mxu0 0.0
          %2059 = vmatprep.subr.mxu0 0.0
          %2060 = vmatpush1.msra.mxu0 0.0
          %2061 = vmatprep.subr.mxu0 0.0
          %2062 = vmatpush1.msra.mxu0 0.0
          %2063 = vmatprep.subr.mxu0 0.0
          %2064 = vmatpush1.msra.mxu0 0.0
          %2065 = vmatprep.subr.mxu0 0.0
          %2066 = vmatpush1.msra.mxu0 0.0
          %2067 = vmatprep.subr.mxu0 0.0
          %2068 = vmatpush1.msra.mxu0 0.0
          %2069 = vmatprep.mubr.f32.mxu0 0.0
          %2070 = vmatmul.mubr.f32.gmra.mrb[0].mxu0 %v1950
          %v2071 = vpop.f32.mrb[0].mxu0
          %v2072 = vadd.f32 %v2003, %v2071
          %v2073 = vpop.f32.mrb[0].mxu0
          %2074 = vmatprep.mubr.f32.mxu0 0.0
          %2075 = vmatmul.mubr.f32.gmra.mrb[0].mxu0 %v1951
          %v2076 = vpop.f32.mrb[0].mxu0
          %v2077 = vadd.f32 %v2003, %v2076
          %v2078 = vpop.f32.mrb[0].mxu0
          %2079 = vmatprep.mubr.f32.mxu0 0.0
          %2080 = vmatmul.mubr.f32.gmra.mrb[0].mxu0 %v1952
          %v2081 = vpop.f32.mrb[0].mxu0
          %v2082 = vadd.f32 %v2003, %v2081
          %v2083 = vpop.f32.mrb[0].mxu0
          %2084 = vmatprep.mubr.f32.mxu0 0.0
          %2085 = vmatmul.mubr.f32.gmra.mrb[0].mxu0 %v1953
          %v2086 = vpop.f32.mrb[0].mxu0
          %v2087 = vadd.f32 %v2003, %v2086
          %v2088 = vpop.f32.mrb[0].mxu0
          %2089 = vmatprep.mubr.f32.mxu0 0.0
          %2090 = vmatmul.mubr.f32.gmra.mrb[0].mxu0 %v1954
          %v2091 = vpop.f32.mrb[0].mxu0
          %v2092 = vadd.f32 %v2003, %v2091
          %v2093 = vpop.f32.mrb[0].mxu0
          %2094 = vmatprep.mubr.f32.mxu0 0.0
          %2095 = vmatmul.mubr.f32.gmra.mrb[0].mxu0 %v1955
          %v2096 = vpop.f32.mrb[0].mxu0
          %v2097 = vadd.f32 %v2003, %v2096
          %v2098 = vpop.f32.mrb[0].mxu0
          %2099 = vmatprep.mubr.f32.mxu0 0.0
          %2100 = vmatmul.mubr.f32.gmra.mrb[0].mxu0 %v1956
          %v2101 = vpop.f32.mrb[0].mxu0
          %v2102 = vadd.f32 %v2003, %v2101
          %v2103 = vpop.f32.mrb[0].mxu0
          %2104 = vmatprep.mubr.f32.mxu0 0.0
          %2105 = vmatmul.mubr.f32.gmra.mrb[0].mxu0 %v1957
          %v2106 = vpop.f32.mrb[0].mxu0
          %v2107 = vadd.f32 %v2003, %v2106
          %v2108 = vpop.f32.mrb[0].mxu0
          %2109 = vmatprep.mubr.f32.mxu0 0.0
          %2110 = vmatmul.mubr.f32.gmra.mrb[0].mxu0 %v1958
          %v2111 = vpop.f32.mrb[0].mxu0
          %v2112 = vadd.f32 %v2003, %v2111
          %v2113 = vpop.f32.mrb[0].mxu0
          %2114 = vmatprep.mubr.f32.mxu0 0.0
          %2115 = vmatmul.mubr.f32.gmra.mrb[0].mxu0 %v1959
          %v2116 = vpop.f32.mrb[0].mxu0
          %v2117 = vadd.f32 %v2003, %v2116
          %v2118 = vpop.f32.mrb[0].mxu0
          %2119 = vmatprep.mubr.f32.mxu0 0.0
          %2120 = vmatmul.mubr.f32.gmra.mrb[0].mxu0 %v1960
          %v2121 = vpop.f32.mrb[0].mxu0
          %v2122 = vadd.f32 %v2003, %v2121
          %v2123 = vpop.f32.mrb[0].mxu0
          %2124 = vmatprep.mubr.f32.mxu0 0.0
          %2125 = vmatmul.mubr.f32.gmra.mrb[0].mxu0 %v1961
          %v2126 = vpop.f32.mrb[0].mxu0
          %v2127 = vadd.f32 %v2003, %v2126
          %v2128 = vpop.f32.mrb[0].mxu0
          %2129 = vmatprep.mubr.f32.mxu0 0.0
          %2130 = vmatmul.mubr.f32.gmra.mrb[0].mxu0 %v1962
          %v2131 = vpop.f32.mrb[0].mxu0
          %v2132 = vadd.f32 %v2003, %v2131
          %v2133 = vpop.f32.mrb[0].mxu0
          %2134 = vmatprep.mubr.f32.mxu0 0.0
          %2135 = vmatmul.mubr.f32.gmra.mrb[0].mxu0 %v1963
          %v2136 = vpop.f32.mrb[0].mxu0
          %v2137 = vadd.f32 %v2003, %v2136
          %v2138 = vpop.f32.mrb[0].mxu0
          %2139 = vmatprep.mubr.f32.mxu0 0.0
          %2140 = vmatmul.mubr.f32.gmra.mrb[0].mxu0 %v1964
          %v2141 = vpop.f32.mrb[0].mxu0
          %v2142 = vadd.f32 %v2003, %v2141
          %v2143 = vpop.f32.mrb[0].mxu0
          %2144 = vmatprep.mubr.f32.mxu0 0.0
          %2145 = vmatmul.mubr.f32.gmra.mrb[0].mxu0 %v1965
          %v2146 = vpop.f32.mrb[0].mxu0
          %v2147 = vadd.f32 %v2003, %v2146
          %v2148 = vpop.f32.mrb[0].mxu0
          %2149 = vmatprep.mubr.f32.mxu0 0.0
          %2150 = vmatmul.mubr.f32.gmra.mrb[0].mxu0 %v1966
          %v2151 = vpop.f32.mrb[0].mxu0
          %v2152 = vadd.f32 %v2003, %v2151
          %v2153 = vpop.f32.mrb[0].mxu0
          %2154 = vmatprep.mubr.f32.mxu0 0.0
          %2155 = vmatmul.mubr.f32.gmra.mrb[0].mxu0 %v1967
          %v2156 = vpop.f32.mrb[0].mxu0
          %v2157 = vadd.f32 %v2003, %v2156
          %v2158 = vpop.f32.mrb[0].mxu0
          %2159 = vmatprep.mubr.f32.mxu0 0.0
          %2160 = vmatmul.mubr.f32.gmra.mrb[0].mxu0 %v1968
          %v2161 = vpop.f32.mrb[0].mxu0
          %v2162 = vadd.f32 %v2003, %v2161
          %v2163 = vpop.f32.mrb[0].mxu0
          %2164 = vmatprep.mubr.f32.mxu0 0.0
          %2165 = vmatmul.mubr.f32.gmra.mrb[0].mxu0 %v1969
          %v2166 = vpop.f32.mrb[0].mxu0
          %v2167 = vadd.f32 %v2003, %v2166
          %v2168 = vpop.f32.mrb[0].mxu0
          %2169 = vmatprep.mubr.f32.mxu0 0.0
          %2170 = vmatmul.mubr.f32.gmra.mrb[0].mxu0 %v1970
          %v2171 = vpop.f32.mrb[0].mxu0
          %v2172 = vadd.f32 %v2003, %v2171
          %v2173 = vpop.f32.mrb[0].mxu0
          %2174 = vmatprep.mubr.f32.mxu0 0.0
          %2175 = vmatmul.mubr.f32.gmra.mrb[0].mxu0 %v1971
          %v2176 = vpop.f32.mrb[0].mxu0
          %v2177 = vadd.f32 %v2003, %v2176
          %v2178 = vpop.f32.mrb[0].mxu0
          %2179 = vmatprep.mubr.f32.mxu0 0.0
          %2180 = vmatmul.mubr.f32.gmra.mrb[0].mxu0 %v1972
          %v2181 = vpop.f32.mrb[0].mxu0
          %v2182 = vadd.f32 %v2003, %v2181
          %v2183 = vpop.f32.mrb[0].mxu0
          %2184 = vmatprep.mubr.f32.mxu0 0.0
          %2185 = vmatmul.mubr.f32.gmra.mrb[0].mxu0 %v1973
          %v2186 = vpop.f32.mrb[0].mxu0
          %v2187 = vadd.f32 %v2003, %v2186
          %v2188 = vpop.f32.mrb[0].mxu0
          %2189 = vmatprep.mubr.f32.mxu0 0.0
          %2190 = vmatmul.mubr.f32.gmra.mrb[0].mxu0 %v1974
          %v2191 = vpop.f32.mrb[0].mxu0
          %v2192 = vadd.f32 %v2003, %v2191
          %v2193 = vpop.f32.mrb[0].mxu0
          %2194 = vmatprep.mubr.f32.mxu0 0.0
          %2195 = vmatmul.mubr.f32.gmra.mrb[0].mxu0 %v1975
          %v2196 = vpop.f32.mrb[0].mxu0
          %v2197 = vadd.f32 %v2003, %v2196
          %v2198 = vpop.f32.mrb[0].mxu0
          %2199 = vmatprep.mubr.f32.mxu0 0.0
          %2200 = vmatmul.mubr.f32.gmra.mrb[0].mxu0 %v1976
          %v2201 = vpop.f32.mrb[0].mxu0
          %v2202 = vadd.f32 %v2003, %v2201
          %v2203 = vpop.f32.mrb[0].mxu0
          %2204 = vmatprep.mubr.f32.mxu0 0.0
          %2205 = vmatmul.mubr.f32.gmra.mrb[0].mxu0 %v1977
          %v2206 = vpop.f32.mrb[0].mxu0
          %v2207 = vadd.f32 %v2003, %v2206
          %v2208 = vpop.f32.mrb[0].mxu0
          %2209 = vmatprep.mubr.f32.mxu0 0.0
          %2210 = vmatmul.mubr.f32.gmra.mrb[0].mxu0 %v1978
          %v2211 = vpop.f32.mrb[0].mxu0
          %v2212 = vadd.f32 %v2003, %v2211
          %v2213 = vpop.f32.mrb[0].mxu0
          %2214 = vmatprep.mubr.f32.mxu0 0.0
          %2215 = vmatmul.mubr.f32.gmra.mrb[0].mxu0 %v1979
          %v2216 = vpop.f32.mrb[0].mxu0
          %v2217 = vadd.f32 %v2003, %v2216
          %v2218 = vpop.f32.mrb[0].mxu0
          %2219 = vmatprep.mubr.f32.mxu0 0.0
          %2220 = vmatmul.mubr.f32.gmra.mrb[0].mxu0 %v1980
          %v2221 = vpop.f32.mrb[0].mxu0
          %v2222 = vadd.f32 %v2003, %v2221
          %v2223 = vpop.f32.mrb[0].mxu0
          %2224 = vmatprep.mubr.f32.mxu0 0.0
          %2225 = vmatmul.mubr.f32.gmra.mrb[0].mxu0 %v1981
          %v2226 = vpop.f32.mrb[0].mxu0
          %v2227 = vadd.f32 %v2003, %v2226
          %v2228 = vpop.f32.mrb[0].mxu0
          %2229 = vdwg.mxu0
          %2230 = vst [vmem:[%s329] sm:$0xff] %v2072
          %2231 = vst [vmem:[%s329 + $0x8] sm:$0xff] %v2077
          %2232 = vst [vmem:[%s329 + $0x10] sm:$0xff] %v2082
          %2233 = vst [vmem:[%s329 + $0x18] sm:$0xff] %v2087
          %2234 = vst [vmem:[%s329 + $0x20] sm:$0xff] %v2092
          %2235 = vst [vmem:[%s329 + $0x28] sm:$0xff] %v2097
          %2236 = vst [vmem:[%s329 + $0x30] sm:$0xff] %v2102
          %2237 = vst [vmem:[%s329 + $0x38] sm:$0xff] %v2107
          %2238 = vst [vmem:[%s329 + $0x40] sm:$0xff] %v2112
          %2239 = vst [vmem:[%s329 + $0x48] sm:$0xff] %v2117
          %2240 = vst [vmem:[%s329 + $0x50] sm:$0xff] %v2122
          %2241 = vst [vmem:[%s329 + $0x58] sm:$0xff] %v2127
          %2242 = vst [vmem:[%s329 + $0x60] sm:$0xff] %v2132
          %2243 = vst [vmem:[%s329 + $0x68] sm:$0xff] %v2137
          %2244 = vst [vmem:[%s329 + $0x70] sm:$0xff] %v2142
          %2245 = vst [vmem:[%s329 + $0x78] sm:$0xff] %v2147
          %2246 = vst [vmem:[%s329 + $0x80] sm:$0xff] %v2152
          %2247 = vst [vmem:[%s329 + $0x88] sm:$0xff] %v2157
          %2248 = vst [vmem:[%s329 + $0x90] sm:$0xff] %v2162
          %2249 = vst [vmem:[%s329 + $0x98] sm:$0xff] %v2167
          %2250 = vst [vmem:[%s329 + $0xa0] sm:$0xff] %v2172
          %2251 = vst [vmem:[%s329 + $0xa8] sm:$0xff] %v2177
          %2252 = vst [vmem:[%s329 + $0xb0] sm:$0xff] %v2182
          %2253 = vst [vmem:[%s329 + $0xb8] sm:$0xff] %v2187
          %2254 = vst [vmem:[%s329 + $0xc0] sm:$0xff] %v2192
          %2255 = vst [vmem:[%s329 + $0xc8] sm:$0xff] %v2197
          %2256 = vst [vmem:[%s329 + $0xd0] sm:$0xff] %v2202
          %2257 = vst [vmem:[%s329 + $0xd8] sm:$0xff] %v2207
          %2258 = vst [vmem:[%s329 + $0xe0] sm:$0xff] %v2212
          %2259 = vst [vmem:[%s329 + $0xe8] sm:$0xff] %v2217
          %2260 = vst [vmem:[%s329 + $0xf0] sm:$0xff] %v2222
          %2261 = vst [vmem:[%s329 + $0xf8] sm:$0xff] %v2227
        $region64: #{tpu_custom_call.1} parent=47 // pred_fallthru
          _
        %s2262 = sand.u32 %s203, 1
        %s2263 = scalar_lea.sflag [#allocation5], %s2262
        %s2264 = sand.u32 %s203, 1
        %s2265 = smul.addr %s2264, 256
        %s2266 = scalar_lea.vmem [#allocation6], %s2265
        // Predicated region
        $region65: #{tpu_custom_call.1} parent=47 // pred_check
          %p2267 = pneg %p213
        $region66: #{tpu_custom_call.1} parent=47 // pred_check_branch
          %2269 = sbr.rel (%p2267) target = $region68
        $region67: #{tpu_custom_call.1} parent=47 // pred_region
          %s2270 = smul.u32 32, %s28
          %s2272 = ssub.s32 4096, 4096
          %2273 = vsyncadd %s2263, %s2272
          %s2274 = smul.addr %s2270, 128
          %s2275 = scalar_lea.hbm %s7, %s2274
          %s2276 = sshll.u32 %s2266, 4
          %s2277 = int_to_ptr.vmem [resolvable:$true] %s2276
          %2282 = dma.vmem_to_hbm [thread:$0]  %s2277, 4096, %s2275, %s2263, 128, 128, 8
        $region68: #{tpu_custom_call.1} parent=47 // pred_fallthru
          _
      $region48: #{tpu_custom_call.1} parent=5 // pred_fallthru
        _
      %p2283 = scmp.le.s32.totalorder 2, %s19
      // Predicated region
      $region69: #{tpu_custom_call.1} parent=5 // pred_check
        %p2284 = pneg %p2283
      $region70: #{tpu_custom_call.1} parent=5 // pred_check_branch
        %2286 = sbr.rel (%p2284) target = $region72
      $region71: #{tpu_custom_call.1} parent=5 // pred_region
        %s2287 = ssub.s32 %s19, 2
        // Predicated region
        $region73: #{tpu_custom_call.1} parent=71 // pred_check
          %p2288 = pneg %p219
        $region74: #{tpu_custom_call.1} parent=71 // pred_check_branch
          %2290 = sbr.rel (%p2288) target = $region76
        $region75: #{tpu_custom_call.1} parent=71 // pred_region
          %s2291 = sand.u32 %s204, 1
          %s2292 = scalar_lea.sflag [#allocation5], %s2291
          %s2293 = sand.u32 %s204, 1
          %s2294 = smul.addr %s2293, 256
          %s2295 = scalar_lea.vmem [#allocation6], %s2294
          %2296 = dma.done %s2292, 4096
        $region76: #{tpu_custom_call.1} parent=71 // pred_fallthru
          _
      $region72: #{tpu_custom_call.1} parent=5 // pred_fallthru
        _
    $region6: #{tpu_custom_call.1} parent=1 // loop_footer
      %s23 = sadd.s32 1, %s19
    $region7: #{tpu_custom_call.1} parent=1 // loop_footer_branch
      %18 = sbr.rel target = $region3
    $region8: #{tpu_custom_call.1} parent=1 // loop_exit
      _
    %2297 = vsyncpa [#allocation4], 1
    %s2298 = scalar_lea.sflag [#allocation4], 1
    %2299 = vsyncpa %s2298, 1
    %2300 = vsyncpa [#allocation5], 1
    %s2301 = scalar_lea.sflag [#allocation5], 1
    %2302 = vsyncpa %s2301, 1

</llo_original>
